<compile_context>
chip_gen: v7x
topology: tpu7x:2x2x1
jax: 0.10.0
libtpu: 0.0.40
codegen_flags: <defaults>
</compile_context>

<pallas_src>
import functools

import jax
import jax.numpy as jnp
from jax.experimental import pallas as pl
from jax.experimental.pallas import tpu as pltpu


# ---------------------------------------------------------------------------
# Pass 1: 3x3 conv as one fused MXU matmul + ReLU, plus per-tile channel sums.
# ---------------------------------------------------------------------------
def _conv_relu_stats_kernel(xm_ref, xh_ref, wconv_ref, bconv_ref,
                            h_ref, psum_ref):
    """One grid step == one (image, spatial tile), channel-major.

    xm_ref   : (Cin, tile_h, W+2) bf16  main rows (width-padded NCHW slab)
    xh_ref   : (Cin, 2, W+2)      bf16  halo rows (row above, row below)
    wconv_ref: (Cout, 9*Cin)      bf16  conv taps, col = (ky*3+kx)*Cin + ci
    bconv_ref: (Cout, 1)          f32
    h_ref    : (Cout, tile_h*W)   bf16  conv+ReLU activations (lane-dense)
    psum_ref : (Cout, 1)          f32   per-tile channel sums (no carry)
    """
    cin, th, wp = xm_ref.shape
    w = wp - 2
    thw = th * w

    xm = xm_ref[...]
    top = xh_ref[:, 0:1, :]
    bot = xh_ref[:, 1:2, :]

    # Row slabs for the three ky taps (padded-row windows of height tile_h).
    slabs = (
        jnp.concatenate([top, xm[:, :th - 1, :]], axis=1),   # ky = 0
        xm,                                                   # ky = 1
        jnp.concatenate([xm[:, 1:, :], bot], axis=1),         # ky = 2
    )

    # Build the (9*Cin, tile_h*W) patch once, then a single K=9*Cin matmul
    # (accumulator touched once; no per-tap accumulate rounds).
    chunks = []
    for ky in range(3):
        for kx in range(3):
            chunks.append(slabs[ky][:, :, kx:kx + w].reshape(cin, thw))
    patch = jnp.concatenate(chunks, axis=0)                   # (9*Cin, thw) bf16

    acc = jnp.dot(wconv_ref[...], patch,
                  preferred_element_type=jnp.float32)         # (Cout, thw) f32
    h = jnp.maximum(acc + bconv_ref[...], 0.0)

    h_ref[...] = h.astype(h_ref.dtype)                        # bf16 to HBM
    # Channel sums in f32 (before the bf16 cast).  Per-tile partials only, so
    # the tile grid axis stays "parallel" (megacore-friendly on v7x).
    psum_ref[...] = jnp.sum(h, axis=1, keepdims=True)


# ---------------------------------------------------------------------------
# Pass 2: apply scSE gating.  h >= 0, so max(h*z2, h*q) == h * max(z2, q).
# ---------------------------------------------------------------------------
def _scse_apply_kernel(h_ref, z2_ref, ws_ref, bs_ref, out_ref):
    """Channel-major gating.

    h_ref : (Cout, tile_h*W) bf16;  z2_ref: (Cout, 1) f32
    ws_ref: (1, Cout) f32;          bs_ref: (1, 1) f32
    out_ref: (Cout, tile_h*W) f32
    """
    h = h_ref[...].astype(jnp.float32)
    # sSE 1x1 projection as an M=1 MXU matmul over the channel (sublane) axis.
    q = jax.nn.sigmoid(
        jnp.dot(ws_ref[...], h, preferred_element_type=jnp.float32)
        + bs_ref[...])                                        # (1, thw)
    gate = jnp.maximum(z2_ref[...], q)                        # (Cout, thw)
    out_ref[...] = h * gate                                   # valid: h >= 0


# ---------------------------------------------------------------------------
# Tiling / VMEM budgets.
# ---------------------------------------------------------------------------
def _vmem_and_tile_budget():
    """(scoped vmem_limit_bytes, per-step tile byte target) per TPU generation."""
    try:
        cap = int(pltpu.get_tpu_info().vmem_capacity_bytes)
    except Exception:
        cap = 64 * 1024 * 1024                # assume the smallest (v7x-like)
    if cap <= 64 * 1024 * 1024:
        # v7x: 64 MiB physical per core -> keep double-buffered tiles modest.
        return 40 * 1024 * 1024, 3 * 1024 * 1024
    # v5e / v6e: 128 MiB physical -> larger scoped limit and larger tiles.
    return 64 * 1024 * 1024, 8 * 1024 * 1024


def _pick_tile_h(H, W, Cin, Cout, tile_h, target_bytes):
    """Pick tile_h by per-step bytes (not rows).  tile_h must divide H, be a
    multiple of 8 (or == H), and give a lane-dense tile (tile_h*W % 128 == 0
    or tile_h == H)."""
    def legal(th):
        return (H % th == 0 and (th % 8 == 0 or th == H)
                and ((th * W) % 128 == 0 or th == H))

    if tile_h is not None:
        if not legal(tile_h):
            raise ValueError(
                f"tile_h={tile_h} must divide H={H}, be a multiple of 8 "
                f"(or == H), and tile_h*W must be a multiple of 128 (or == H*W)")
        return tile_h

    def step_bytes(th):
        x_in = Cin * th * (W + 2) * 2          # bf16 main rows
        h_out = Cout * th * W * 2              # bf16 h tile
        return 2 * (x_in + h_out)              # double buffered

    cands = sorted({th for th in range(8, H + 1, 8) if legal(th)} | {H})
    under = [th for th in cands if step_bytes(th) <= target_bytes]
    return max(under) if under else min(cands)


# ---------------------------------------------------------------------------
# Forward pass matching the PyTorch scSE attention block.  NCHW in / NCHW out.
# ---------------------------------------------------------------------------
@functools.partial(jax.jit, static_argnames=("tile_h",))
def attention_block_forward(x_nchw, params, tile_h=None):
    w_conv, b_conv = params["w_conv"], params["b_conv"]
    w_fc1, b_fc1 = params["w_fc1"], params["b_fc1"]
    w_fc2, b_fc2 = params["w_fc2"], params["b_fc2"]
    w_sse, b_sse = params["w_sse"], params["b_sse"]

    B, Cin, H, W = x_nchw.shape
    Cout = w_conv.shape[0]

    vmem_limit, tile_target = _vmem_and_tile_budget()
    th = _pick_tile_h(H, W, Cin, Cout, tile_h, tile_target)
    n_tiles = H // th
    thw = th * W
    HW = H * W

    # NCHW consumed directly (channel-major): bf16 cast + width-only zero pad.
    xw = jnp.pad(x_nchw.astype(jnp.bfloat16),
                 ((0, 0), (0, 0), (0, 0), (1, 1)))            # (B, Cin, H, W+2)

    # Tiny per-tile halo rows (row above / below each tile; zeros at borders).
    if n_tiles > 1:
        zrow = jnp.zeros((B, Cin, 1, W + 2), jnp.bfloat16)
        above = jnp.concatenate([zrow, xw[:, :, th - 1:H - 1:th, :]], axis=2)
        below = jnp.concatenate([xw[:, :, th:H:th, :], zrow], axis=2)
    else:
        above = jnp.zeros((B, Cin, 1, W + 2), jnp.bfloat16)
        below = above
    halo = jnp.transpose(jnp.stack([above, below], axis=3), (0, 2, 1, 3, 4))
    # (B, n_tiles, Cin, 2, W+2)

    # conv weight (Cout, Cin, 3, 3) -> (Cout, ky, kx, Cin) -> (Cout, 9*Cin)
    wconv = jnp.transpose(w_conv, (0, 2, 3, 1)).reshape(Cout, 9 * Cin)
    wconv = wconv.astype(jnp.bfloat16)
    bconv = b_conv.reshape(Cout, 1).astype(jnp.float32)

    h_flat, psums = pl.pallas_call(
        _conv_relu_stats_kernel,
        out_shape=(jax.ShapeDtypeStruct((B, Cout, HW), jnp.bfloat16),
                   jax.ShapeDtypeStruct((B, n_tiles, Cout, 1), jnp.float32)),
        grid=(B, n_tiles),
        in_specs=[
            pl.BlockSpec((None, Cin, th, W + 2), lambda b, t: (b, 0, t, 0)),
            pl.BlockSpec((None, None, Cin, 2, W + 2),
                         lambda b, t: (b, t, 0, 0, 0)),
            pl.BlockSpec((Cout, 9 * Cin), lambda b, t: (0, 0)),
            pl.BlockSpec((Cout, 1), lambda b, t: (0, 0)),
        ],
        out_specs=(
            pl.BlockSpec((None, Cout, thw), lambda b, t: (b, 0, t)),
            pl.BlockSpec((None, None, Cout, 1), lambda b, t: (b, t, 0, 0)),
        ),
        compiler_params=pltpu.CompilerParams(
            dimension_semantics=("parallel", "parallel"),
            vmem_limit_bytes=vmem_limit),
    )(xw, halo, wconv, bconv)

    # Tiny per-image cSE MLP on (B, Cout) — plain JAX glue between the passes.
    sums = jnp.sum(psums[..., 0], axis=1)                     # (B, Cout) f32
    means = sums / float(HW)
    z1 = jnp.maximum(means @ w_fc1.T.astype(jnp.float32) + b_fc1, 0.0)
    z2 = jax.nn.sigmoid(z1 @ w_fc2.T.astype(jnp.float32) + b_fc2)  # (B, Cout)
    z2 = z2[..., None]                                         # (B, Cout, 1)

    ws_row = w_sse.reshape(1, Cout).astype(jnp.float32)
    bs = b_sse.reshape(1, 1).astype(jnp.float32)

    out_flat = pl.pallas_call(
        _scse_apply_kernel,
        out_shape=jax.ShapeDtypeStruct((B, Cout, HW), jnp.float32),
        grid=(B, n_tiles),
        in_specs=[
            pl.BlockSpec((None, Cout, thw), lambda b, t: (b, 0, t)),
            pl.BlockSpec((None, Cout, 1), lambda b, t: (b, 0, 0)),
            pl.BlockSpec((1, Cout), lambda b, t: (0, 0)),
            pl.BlockSpec((1, 1), lambda b, t: (0, 0)),
        ],
        out_specs=pl.BlockSpec((None, Cout, thw), lambda b, t: (b, 0, t)),
        compiler_params=pltpu.CompilerParams(
            dimension_semantics=("parallel", "parallel"),
            vmem_limit_bytes=vmem_limit),
    )(h_flat, z2, ws_row, bs)

    # (B, Cout, H*W) is exactly row-major NCHW: the reshape is free metadata.
    return out_flat.reshape(B, Cout, H, W)


# ---------------------------------------------------------------------------
# Pure-JAX reference (mirrors the PyTorch module); conv inputs are bf16 like
# the kernel path so the comparison isolates the kernel itself.
# ---------------------------------------------------------------------------
def _reference_forward(x_nchw, params):
    x_nhwc = jnp.transpose(x_nchw, (0, 2, 3, 1))
    w_hwio = jnp.transpose(params["w_conv"], (2, 3, 1, 0))    # (3,3,Cin,Cout)
    h = jax.lax.conv_general_dilated(
        x_nhwc.astype(jnp.bfloat16), w_hwio.astype(jnp.bfloat16),
        (1, 1), "SAME", dimension_numbers=("NHWC", "HWIO", "NHWC"),
        preferred_element_type=jnp.float32) + params["b_conv"]
    h = jnp.maximum(h, 0.0)                                   # (B,H,W,Cout)
    # channel SE
    s = jnp.mean(h, axis=(1, 2))                              # (B, Cout)
    z1 = jnp.maximum(s @ params["w_fc1"].T + params["b_fc1"], 0.0)
    z2 = jax.nn.sigmoid(z1 @ params["w_fc2"].T + params["b_fc2"])
    cse = h * z2[:, None, None, :]
    # spatial SE
    q = jax.nn.sigmoid(jnp.einsum("bhwc,c->bhw", h, params["w_sse"])
                       + params["b_sse"])
    sse = h * q[..., None]
    out = jnp.maximum(cse, sse)
    return jnp.transpose(out, (0, 3, 1, 2))


def init_params(key, dim, dim_out):
    cred = dim_out // 2
    ks = jax.random.split(key, 8)
    scale = 0.1
    return {
        "w_conv": scale * jax.random.normal(ks[0], (dim_out, dim, 3, 3), jnp.float32),
        "b_conv": scale * jax.random.normal(ks[1], (dim_out,), jnp.float32),
        "w_fc1":  scale * jax.random.normal(ks[2], (cred, dim_out), jnp.float32),
        "b_fc1":  scale * jax.random.normal(ks[3], (cred,), jnp.float32),
        "w_fc2":  scale * jax.random.normal(ks[4], (dim_out, cred), jnp.float32),
        "b_fc2":  scale * jax.random.normal(ks[5], (dim_out,), jnp.float32),
        "w_sse":  scale * jax.random.normal(ks[6], (dim_out,), jnp.float32),
        "b_sse":  scale * jax.random.normal(ks[7], (1,), jnp.float32),
    }


if __name__ == "__main__":
    B, dim, dim_out, H, W = 2, 4, 8, 16, 16
    key = jax.random.PRNGKey(0)
    k_x, k_p = jax.random.split(key)
    x = jax.random.normal(k_x, (B, dim, H, W), jnp.float32)    # NCHW like PyTorch
    params = init_params(k_p, dim, dim_out)

    ref = jax.block_until_ready(_reference_forward(x, params))

    # Explicitly tiled path (2 spatial tiles per image, exercises the halo
    # handling) + auto (byte-budgeted) path.
    out_tiled = jax.block_until_ready(attention_block_forward(x, params, tile_h=8))
    out_auto = jax.block_until_ready(attention_block_forward(x, params))

    # Tolerance accounts for the bf16 storage of the h intermediate
    # (~2^-9 relative); channel sums / gates are still accumulated in f32.
    for out in (out_tiled, out_auto):
        assert out.shape == (B, dim_out, H, W)
        err = float(jnp.max(jnp.abs(out - ref)))
        assert jnp.allclose(out, ref, rtol=2e-2, atol=3e-3), f"max abs diff {err}"

    print("KERNEL_OK")
</pallas_src>

<mosaic_0001>
module attributes {stable_mosaic.version = 11 : i64} {
  func.func @_conv_relu_stats_kernel(%arg0: i32, %arg1: i32, %arg2: memref<1x4x8x18xbf16, #tpu.memory_space<vmem>>, %arg3: memref<1x1x4x2x18xbf16, #tpu.memory_space<vmem>>, %arg4: memref<8x36xbf16, #tpu.memory_space<vmem>>, %arg5: memref<8x1xf32, #tpu.memory_space<vmem>>, %arg6: memref<1x8x128xbf16, #tpu.memory_space<vmem>>, %arg7: memref<1x1x8x1xf32, #tpu.memory_space<vmem>>) attributes {dimension_semantics = [#tpu.dimension_semantics<parallel>, #tpu.dimension_semantics<parallel>], iteration_bounds = array<i64: 2, 2>, scalar_prefetch = 0 : i64, scratch_operands = 0 : i64, tpu.core_type = #tpu.core_type<tc>, window_params = [{transform_indices = @transform_0, window_bounds = array<i64: 1, 4, 8, 18>}, {transform_indices = @transform_1, window_bounds = array<i64: 1, 1, 4, 2, 18>}, {pipeline_mode = #tpu.pipeline_mode<synchronous>, transform_indices = @transform_2, window_bounds = array<i64: 8, 36>}, {pipeline_mode = #tpu.pipeline_mode<synchronous>, transform_indices = @transform_3, window_bounds = array<i64: 8, 1>}, {transform_indices = @transform_4, window_bounds = array<i64: 1, 8, 128>}, {transform_indices = @transform_5, window_bounds = array<i64: 1, 1, 8, 1>}]} {
    %c0 = arith.constant 0 : index
    %c0_0 = arith.constant 0 : index
    %c0_1 = arith.constant 0 : index
    %c0_2 = arith.constant 0 : index
    %0 = vector.load %arg2[%c0, %c0_0, %c0_1, %c0_2] : memref<1x4x8x18xbf16, #tpu.memory_space<vmem>>, vector<1x4x8x18xbf16>
    %1 = vector.shape_cast %0 : vector<1x4x8x18xbf16> to vector<4x8x18xbf16>
    %c0_3 = arith.constant 0 : index
    %c0_4 = arith.constant 0 : index
    %c0_5 = arith.constant 0 : index
    %c0_6 = arith.constant 0 : index
    %c0_7 = arith.constant 0 : index
    %2 = vector.load %arg3[%c0_3, %c0_4, %c0_5, %c0_6, %c0_7] : memref<1x1x4x2x18xbf16, #tpu.memory_space<vmem>>, vector<1x1x4x1x18xbf16>
    %3 = vector.shape_cast %2 : vector<1x1x4x1x18xbf16> to vector<4x1x18xbf16>
    %c0_8 = arith.constant 0 : index
    %c0_9 = arith.constant 0 : index
    %c0_10 = arith.constant 0 : index
    %c1 = arith.constant 1 : index
    %c0_11 = arith.constant 0 : index
    %4 = vector.load %arg3[%c0_8, %c0_9, %c0_10, %c1, %c0_11] : memref<1x1x4x2x18xbf16, #tpu.memory_space<vmem>>, vector<1x1x4x1x18xbf16>
    %5 = vector.shape_cast %4 : vector<1x1x4x1x18xbf16> to vector<4x1x18xbf16>
    %6 = vector.extract_strided_slice %1 {offsets = [0, 0, 0], sizes = [4, 7, 18], strides = [1, 1, 1]} : vector<4x8x18xbf16> to vector<4x7x18xbf16>
    %7 = tpu.concatenate %3, %6 in 1 : vector<4x1x18xbf16>, vector<4x7x18xbf16> -> vector<4x8x18xbf16>
    %8 = vector.extract_strided_slice %1 {offsets = [0, 1, 0], sizes = [4, 7, 18], strides = [1, 1, 1]} : vector<4x8x18xbf16> to vector<4x7x18xbf16>
    %9 = tpu.concatenate %8, %5 in 1 : vector<4x7x18xbf16>, vector<4x1x18xbf16> -> vector<4x8x18xbf16>
    %10 = vector.extract_strided_slice %7 {offsets = [0, 0, 0], sizes = [4, 8, 16], strides = [1, 1, 1]} : vector<4x8x18xbf16> to vector<4x8x16xbf16>
    %11 = vector.shape_cast %10 : vector<4x8x16xbf16> to vector<4x128xbf16>
    %12 = vector.extract_strided_slice %7 {offsets = [0, 0, 1], sizes = [4, 8, 16], strides = [1, 1, 1]} : vector<4x8x18xbf16> to vector<4x8x16xbf16>
    %13 = vector.shape_cast %12 : vector<4x8x16xbf16> to vector<4x128xbf16>
    %14 = vector.extract_strided_slice %7 {offsets = [0, 0, 2], sizes = [4, 8, 16], strides = [1, 1, 1]} : vector<4x8x18xbf16> to vector<4x8x16xbf16>
    %15 = vector.shape_cast %14 : vector<4x8x16xbf16> to vector<4x128xbf16>
    %16 = vector.extract_strided_slice %1 {offsets = [0, 0, 0], sizes = [4, 8, 16], strides = [1, 1, 1]} : vector<4x8x18xbf16> to vector<4x8x16xbf16>
    %17 = vector.shape_cast %16 : vector<4x8x16xbf16> to vector<4x128xbf16>
    %18 = vector.extract_strided_slice %1 {offsets = [0, 0, 1], sizes = [4, 8, 16], strides = [1, 1, 1]} : vector<4x8x18xbf16> to vector<4x8x16xbf16>
    %19 = vector.shape_cast %18 : vector<4x8x16xbf16> to vector<4x128xbf16>
    %20 = vector.extract_strided_slice %1 {offsets = [0, 0, 2], sizes = [4, 8, 16], strides = [1, 1, 1]} : vector<4x8x18xbf16> to vector<4x8x16xbf16>
    %21 = vector.shape_cast %20 : vector<4x8x16xbf16> to vector<4x128xbf16>
    %22 = vector.extract_strided_slice %9 {offsets = [0, 0, 0], sizes = [4, 8, 16], strides = [1, 1, 1]} : vector<4x8x18xbf16> to vector<4x8x16xbf16>
    %23 = vector.shape_cast %22 : vector<4x8x16xbf16> to vector<4x128xbf16>
    %24 = vector.extract_strided_slice %9 {offsets = [0, 0, 1], sizes = [4, 8, 16], strides = [1, 1, 1]} : vector<4x8x18xbf16> to vector<4x8x16xbf16>
    %25 = vector.shape_cast %24 : vector<4x8x16xbf16> to vector<4x128xbf16>
    %26 = vector.extract_strided_slice %9 {offsets = [0, 0, 2], sizes = [4, 8, 16], strides = [1, 1, 1]} : vector<4x8x18xbf16> to vector<4x8x16xbf16>
    %27 = vector.shape_cast %26 : vector<4x8x16xbf16> to vector<4x128xbf16>
    %28 = tpu.concatenate %11, %13, %15, %17, %19, %21, %23, %25, %27 in 0 : vector<4x128xbf16>, vector<4x128xbf16>, vector<4x128xbf16>, vector<4x128xbf16>, vector<4x128xbf16>, vector<4x128xbf16>, vector<4x128xbf16>, vector<4x128xbf16>, vector<4x128xbf16> -> vector<36x128xbf16>
    %c0_12 = arith.constant 0 : index
    %c0_13 = arith.constant 0 : index
    %29 = vector.load %arg4[%c0_12, %c0_13] : memref<8x36xbf16, #tpu.memory_space<vmem>>, vector<8x36xbf16>
    %cst = arith.constant dense<0.000000e+00> : vector<8x128xf32>
    %30 = tpu.matmul %29, %28, %cst {dimension_numbers = #tpu.dot_dimension_numbers<[1], [0], [0], [1], [0, 0, 1, 1], [], []>} : vector<8x36xbf16>, vector<36x128xbf16>, vector<8x128xf32> -> vector<8x128xf32>
    %c0_14 = arith.constant 0 : index
    %c0_15 = arith.constant 0 : index
    %31 = vector.load %arg5[%c0_14, %c0_15] : memref<8x1xf32, #tpu.memory_space<vmem>>, vector<8x1xf32>
    %32 = vector.broadcast %31 : vector<8x1xf32> to vector<8x128xf32>
    %33 = arith.addf %30, %32 : vector<8x128xf32>
    %cst_16 = arith.constant 0.000000e+00 : f32
    %34 = vector.broadcast %cst_16 : f32 to vector<8x128xf32>
    %35 = arith.maximumf %33, %34 : vector<8x128xf32>
    %36 = arith.truncf %35 : vector<8x128xf32> to vector<8x128xbf16>
    %c0_17 = arith.constant 0 : index
    %c0_18 = arith.constant 0 : index
    %c0_19 = arith.constant 0 : index
    %37 = vector.load %arg6[%c0_17, %c0_18, %c0_19] : memref<1x8x128xbf16, #tpu.memory_space<vmem>>, vector<1x8x128xbf16>
    %38 = vector.shape_cast %37 : vector<1x8x128xbf16> to vector<8x128xbf16>
    %39 = vector.shape_cast %36 : vector<8x128xbf16> to vector<1x8x128xbf16>
    tpu.vector_store %arg6[%c0_17, %c0_18, %c0_19], %39 {strides = array<i32>} : memref<1x8x128xbf16, #tpu.memory_space<vmem>>, vector<1x8x128xbf16>,
    %cst_20 = arith.constant dense<0.000000e+00> : vector<8xf32>
    %40 = vector.multi_reduction <add>, %35, %cst_20 [1] : vector<8x128xf32> to vector<8xf32>
    %41 = vector.shape_cast %40 : vector<8xf32> to vector<8x1xf32>
    %c0_21 = arith.constant 0 : index
    %c0_22 = arith.constant 0 : index
    %c0_23 = arith.constant 0 : index
    %c0_24 = arith.constant 0 : index
    %42 = vector.load %arg7[%c0_21, %c0_22, %c0_23, %c0_24] : memref<1x1x8x1xf32, #tpu.memory_space<vmem>>, vector<1x1x8x1xf32>
    %43 = vector.shape_cast %42 : vector<1x1x8x1xf32> to vector<8x1xf32>
    %44 = vector.shape_cast %41 : vector<8x1xf32> to vector<1x1x8x1xf32>
    tpu.vector_store %arg7[%c0_21, %c0_22, %c0_23, %c0_24], %44 {strides = array<i32>} : memref<1x1x8x1xf32, #tpu.memory_space<vmem>>, vector<1x1x8x1xf32>,
    return
  }
  func.func @transform_0(%arg0: i32, %arg1: i32) -> (i32, i32, i32, i32) {
    %c0_i32 = arith.constant 0 : i32
    %c0_i32_0 = arith.constant 0 : i32
    %c0_i32_1 = arith.constant 0 : i32
    return %arg0, %c0_i32, %arg1, %c0_i32_0 : i32, i32, i32, i32
  }
  func.func @transform_1(%arg0: i32, %arg1: i32) -> (i32, i32, i32, i32, i32) {
    %c0_i32 = arith.constant 0 : i32
    %c0_i32_0 = arith.constant 0 : i32
    %c0_i32_1 = arith.constant 0 : i32
    %c0_i32_2 = arith.constant 0 : i32
    return %arg0, %arg1, %c0_i32, %c0_i32_0, %c0_i32_1 : i32, i32, i32, i32, i32
  }
  func.func @transform_2(%arg0: i32, %arg1: i32) -> (i32, i32) {
    %c0_i32 = arith.constant 0 : i32
    %c0_i32_0 = arith.constant 0 : i32
    %c0_i32_1 = arith.constant 0 : i32
    return %c0_i32, %c0_i32_0 : i32, i32
  }
  func.func @transform_3(%arg0: i32, %arg1: i32) -> (i32, i32) {
    %c0_i32 = arith.constant 0 : i32
    %c0_i32_0 = arith.constant 0 : i32
    %c0_i32_1 = arith.constant 0 : i32
    return %c0_i32, %c0_i32_0 : i32, i32
  }
  func.func @transform_4(%arg0: i32, %arg1: i32) -> (i32, i32, i32) {
    %c0_i32 = arith.constant 0 : i32
    %c0_i32_0 = arith.constant 0 : i32
    return %arg0, %c0_i32, %arg1 : i32, i32, i32
  }
  func.func @transform_5(%arg0: i32, %arg1: i32) -> (i32, i32, i32, i32) {
    %c0_i32 = arith.constant 0 : i32
    %c0_i32_0 = arith.constant 0 : i32
    %c0_i32_1 = arith.constant 0 : i32
    return %arg0, %arg1, %c0_i32, %c0_i32_0 : i32, i32, i32, i32
  }
}

module attributes {stable_mosaic.version = 11 : i64} {
  func.func @_scse_apply_kernel(%arg0: i32, %arg1: i32, %arg2: memref<1x8x128xbf16, #tpu.memory_space<vmem>>, %arg3: memref<1x8x1xf32, #tpu.memory_space<vmem>>, %arg4: memref<1x8xf32, #tpu.memory_space<vmem>>, %arg5: memref<1x1xf32, #tpu.memory_space<vmem>>, %arg6: memref<1x8x128xf32, #tpu.memory_space<vmem>>) attributes {dimension_semantics = [#tpu.dimension_semantics<parallel>, #tpu.dimension_semantics<parallel>], iteration_bounds = array<i64: 2, 2>, scalar_prefetch = 0 : i64, scratch_operands = 0 : i64, tpu.core_type = #tpu.core_type<tc>, window_params = [{transform_indices = @transform_0, window_bounds = array<i64: 1, 8, 128>}, {transform_indices = @transform_1, window_bounds = array<i64: 1, 8, 1>}, {pipeline_mode = #tpu.pipeline_mode<synchronous>, transform_indices = @transform_2, window_bounds = array<i64: 1, 8>}, {pipeline_mode = #tpu.pipeline_mode<synchronous>, transform_indices = @transform_3, window_bounds = array<i64: 1, 1>}, {transform_indices = @transform_4, window_bounds = array<i64: 1, 8, 128>}]} {
    %c0 = arith.constant 0 : index
    %c0_0 = arith.constant 0 : index
    %c0_1 = arith.constant 0 : index
    %0 = vector.load %arg2[%c0, %c0_0, %c0_1] : memref<1x8x128xbf16, #tpu.memory_space<vmem>>, vector<1x8x128xbf16>
    %1 = vector.shape_cast %0 : vector<1x8x128xbf16> to vector<8x128xbf16>
    %2 = arith.extf %1 : vector<8x128xbf16> to vector<8x128xf32>
    %c0_2 = arith.constant 0 : index
    %c0_3 = arith.constant 0 : index
    %3 = vector.load %arg4[%c0_2, %c0_3] : memref<1x8xf32, #tpu.memory_space<vmem>>, vector<1x8xf32>
    %cst = arith.constant dense<0.000000e+00> : vector<1x128xf32>
    %4 = tpu.matmul %3, %2, %cst {dimension_numbers = #tpu.dot_dimension_numbers<[1], [0], [0], [1], [0, 0, 1, 1], [], []>} : vector<1x8xf32>, vector<8x128xf32>, vector<1x128xf32> -> vector<1x128xf32>
    %c0_4 = arith.constant 0 : index
    %c0_5 = arith.constant 0 : index
    %5 = vector.load %arg5[%c0_4, %c0_5] : memref<1x1xf32, #tpu.memory_space<vmem>>, vector<1x1xf32>
    %6 = vector.broadcast %5 : vector<1x1xf32> to vector<1x128xf32>
    %7 = arith.addf %4, %6 : vector<1x128xf32>
    %8 = arith.negf %7 : vector<1x128xf32>
    %9 = math.exp %8 : vector<1x128xf32>
    %cst_6 = arith.constant 1.000000e+00 : f32
    %10 = vector.broadcast %cst_6 : f32 to vector<1x128xf32>
    %11 = arith.addf %10, %9 : vector<1x128xf32>
    %12 = arith.divf %10, %11 : vector<1x128xf32>
    %c0_7 = arith.constant 0 : index
    %c0_8 = arith.constant 0 : index
    %c0_9 = arith.constant 0 : index
    %13 = vector.load %arg3[%c0_7, %c0_8, %c0_9] : memref<1x8x1xf32, #tpu.memory_space<vmem>>, vector<1x8x1xf32>
    %14 = vector.shape_cast %13 : vector<1x8x1xf32> to vector<8x1xf32>
    %15 = vector.broadcast %14 : vector<8x1xf32> to vector<8x128xf32>
    %16 = vector.broadcast %12 : vector<1x128xf32> to vector<8x128xf32>
    %17 = arith.maximumf %15, %16 : vector<8x128xf32>
    %18 = arith.mulf %2, %17 : vector<8x128xf32>
    %c0_10 = arith.constant 0 : index
    %c0_11 = arith.constant 0 : index
    %c0_12 = arith.constant 0 : index
    %19 = vector.load %arg6[%c0_10, %c0_11, %c0_12] : memref<1x8x128xf32, #tpu.memory_space<vmem>>, vector<1x8x128xf32>
    %20 = vector.shape_cast %19 : vector<1x8x128xf32> to vector<8x128xf32>
    %21 = vector.shape_cast %18 : vector<8x128xf32> to vector<1x8x128xf32>
    tpu.vector_store %arg6[%c0_10, %c0_11, %c0_12], %21 {strides = array<i32>} : memref<1x8x128xf32, #tpu.memory_space<vmem>>, vector<1x8x128xf32>,
    return
  }
  func.func @transform_0(%arg0: i32, %arg1: i32) -> (i32, i32, i32) {
    %c0_i32 = arith.constant 0 : i32
    %c0_i32_0 = arith.constant 0 : i32
    return %arg0, %c0_i32, %arg1 : i32, i32, i32
  }
  func.func @transform_1(%arg0: i32, %arg1: i32) -> (i32, i32, i32) {
    %c0_i32 = arith.constant 0 : i32
    %c0_i32_0 = arith.constant 0 : i32
    %c0_i32_1 = arith.constant 0 : i32
    return %arg0, %c0_i32, %c0_i32_0 : i32, i32, i32
  }
  func.func @transform_2(%arg0: i32, %arg1: i32) -> (i32, i32) {
    %c0_i32 = arith.constant 0 : i32
    %c0_i32_0 = arith.constant 0 : i32
    %c0_i32_1 = arith.constant 0 : i32
    return %c0_i32, %c0_i32_0 : i32, i32
  }
  func.func @transform_3(%arg0: i32, %arg1: i32) -> (i32, i32) {
    %c0_i32 = arith.constant 0 : i32
    %c0_i32_0 = arith.constant 0 : i32
    %c0_i32_1 = arith.constant 0 : i32
    return %c0_i32, %c0_i32_0 : i32, i32
  }
  func.func @transform_4(%arg0: i32, %arg1: i32) -> (i32, i32, i32) {
    %c0_i32 = arith.constant 0 : i32
    %c0_i32_0 = arith.constant 0 : i32
    return %arg0, %c0_i32, %arg1 : i32, i32, i32
  }
}

</mosaic_0001>

<llo_original>
// kernel: attention_block_forward.3
$region0: #{attention_block_forward.3}
  #allocation0 [shape = 'u32[]', space=smem, size = 0x4, offset = 0x4, fixed_abs, tag = 'smem constant byte address 0x4 - core index']
  #allocation1 [shape = 'u32[144,128]{1,0:T(1,128)}', space=vmem, size = 0x12000, scoped, tag = 'internal scratch']
  #allocation2 [shape = 'f32[1,1]{1,0:T(1,128)S(1)}', space=vmem, size = 0x200, scoped, tag = 'scoped memory for attention_block_forward.3']
  %s0 = inlined_call_operand.vmem [shape: bf16[2,8,256], index: 0, kind: input, shape index: {}]
  %s1 = inlined_call_operand.vmem [shape: f32[2,8,1], index: 1, kind: input, shape index: {}]
  %s2 = inlined_call_operand.vmem [shape: f32[1,8], index: 2, kind: input, shape index: {}]
  %s3 = inlined_call_operand.<no memory space> [shape: f32[1,1], index: 3, kind: input, shape index: {}]
  %s4 = inlined_call_operand.vmem [shape: f32[2,8,256], index: 4, kind: output, shape index: {}]
  %s5 = sld [smem:[#allocation0]]
  $region49: #{attention_block_forward.3} parent=0
    _
  %s7 = ssub.s32 1, %s5
  %s8 = scalar_select 0, %s7, %s5
  %v9 = vstv %s3
  %10 = vst [vmem:[#allocation2] sm:$0x1] %v9
  loop: start=0, step=1, limit=6
  $region2: #{attention_block_forward.3} parent=0 // loop_pre_header
    _
  $region3: #{attention_block_forward.3} parent=0 // loop_header
    %s12 = sphi 0, %s16
    %p13 = scmp.ge.s32.totalorder %s12, 6
    %s19 = sphi 0, %s31
    %s20 = sphi 0, %s27
    %s21 = sphi 0, %s19
    %s22 = sphi 0, %s20
    %s23 = sphi 0, %s21
    %s24 = sphi 0, %s22
    %s36 = sphi 0, %s38
    %s39 = sphi 0, %s36
    %s40 = sphi 0, %s39
    %s56 = sphi 0, %s40
    %s62 = sphi 0, %s64
    %s65 = sphi 0, %s62
    %s66 = sphi 0, %s65
    %s82 = sphi 0, %s66
    %s86 = sphi 0, %s86
    %s88 = sphi 0, %s86
    %s89 = sphi 0, %s88
    %s103 = sphi 0, %s89
    %s107 = sphi 0, %s107
    %s109 = sphi 0, %s107
    %s110 = sphi 0, %s109
    %s124 = sphi 0, %s110
    %s132 = sphi 0, %s134
    %s135 = sphi 0, %s132
    %s136 = sphi 0, %s135
    %s152 = sphi 0, %s136
  $region4: #{attention_block_forward.3} parent=0 // loop_header_branch
    %15 = sbr.rel (%p13) target = $region8
  $region5: #{attention_block_forward.3} parent=0 // loop_body
    %s17 = ssub.s32 %s12, 1
    %s18 = ssub.s32 %s12, 2
    %s25 = sadd.s32 1, %s20
    %p26 = scmp.ge.s32.totalorder %s25, 2
    %s27 = scalar_select %p26, 0, %s25
    %s28 = sadd.s32 1, %s19
    %s29 = scalar_select %p26, %s28, %s19
    %p30 = scmp.ge.s32.totalorder %s29, 2
    %s31 = scalar_select %p30, 0, %s29
    %s32 = ssub.s32 %s19, %s31
    %s33 = ssub.s32 %s20, %s27
    %s34 = sor.u32 %s32, %s33
    %p35 = scmp.eq.s32.totalorder %s34, 0
    %s37 = sadd.s32 %s36, 1
    %s38 = scalar_select %p35, %s36, %s37
    %p41 = pneg %p35
    %p42 = scmp.eq.s32.totalorder %s12, 3
    %p43 = por %p41, %p42
    %p44 = scmp.ne.s32.totalorder %s36, %s39
    %p45 = scmp.eq.s32.totalorder %s12, 0
    %p46 = por %p44, %p45
    %p47 = scmp.ne.s32.totalorder %s36, %s39
    %p48 = scmp.eq.s32.totalorder %s17, 3
    %p49 = por %p47, %p48
    %p50 = scmp.ne.s32.totalorder %s39, %s40
    %p51 = scmp.eq.s32.totalorder %s17, 0
    %p52 = por %p50, %p51
    %p53 = scmp.ne.s32.totalorder %s39, %s40
    %p54 = scmp.eq.s32.totalorder %s18, 3
    %p55 = por %p53, %p54
    %p57 = scmp.ne.s32.totalorder %s40, %s56
    %p58 = scmp.eq.s32.totalorder %s18, 0
    %p59 = por %p57, %p58
    %s60 = ssub.s32 %s19, %s31
    %p61 = scmp.eq.s32.totalorder %s60, 0
    %s63 = sadd.s32 %s62, 1
    %s64 = scalar_select %p61, %s62, %s63
    %p67 = pneg %p61
    %p68 = scmp.eq.s32.totalorder %s12, 3
    %p69 = por %p67, %p68
    %p70 = scmp.ne.s32.totalorder %s62, %s65
    %p71 = scmp.eq.s32.totalorder %s12, 0
    %p72 = por %p70, %p71
    %p73 = scmp.ne.s32.totalorder %s62, %s65
    %p74 = scmp.eq.s32.totalorder %s17, 3
    %p75 = por %p73, %p74
    %p76 = scmp.ne.s32.totalorder %s65, %s66
    %p77 = scmp.eq.s32.totalorder %s17, 0
    %p78 = por %p76, %p77
    %p79 = scmp.ne.s32.totalorder %s65, %s66
    %p80 = scmp.eq.s32.totalorder %s18, 3
    %p81 = por %p79, %p80
    %p83 = scmp.ne.s32.totalorder %s66, %s82
    %p84 = scmp.eq.s32.totalorder %s18, 0
    %p85 = por %p83, %p84
    %s87 = sadd.s32 %s86, 1
    %p90 = scmp.eq.s32.totalorder %s12, 3
    %p91 = scmp.ne.s32.totalorder %s86, %s88
    %p92 = scmp.eq.s32.totalorder %s12, 0
    %p93 = por %p91, %p92
    %p94 = scmp.ne.s32.totalorder %s86, %s88
    %p95 = scmp.eq.s32.totalorder %s17, 3
    %p96 = por %p94, %p95
    %p97 = scmp.ne.s32.totalorder %s88, %s89
    %p98 = scmp.eq.s32.totalorder %s17, 0
    %p99 = por %p97, %p98
    %p100 = scmp.ne.s32.totalorder %s88, %s89
    %p101 = scmp.eq.s32.totalorder %s18, 3
    %p102 = por %p100, %p101
    %p104 = scmp.ne.s32.totalorder %s89, %s103
    %p105 = scmp.eq.s32.totalorder %s18, 0
    %p106 = por %p104, %p105
    %s108 = sadd.s32 %s107, 1
    %p111 = scmp.eq.s32.totalorder %s12, 3
    %p112 = scmp.ne.s32.totalorder %s107, %s109
    %p113 = scmp.eq.s32.totalorder %s12, 0
    %p114 = por %p112, %p113
    %p115 = scmp.ne.s32.totalorder %s107, %s109
    %p116 = scmp.eq.s32.totalorder %s17, 3
    %p117 = por %p115, %p116
    %p118 = scmp.ne.s32.totalorder %s109, %s110
    %p119 = scmp.eq.s32.totalorder %s17, 0
    %p120 = por %p118, %p119
    %p121 = scmp.ne.s32.totalorder %s109, %s110
    %p122 = scmp.eq.s32.totalorder %s18, 3
    %p123 = por %p121, %p122
    %p125 = scmp.ne.s32.totalorder %s110, %s124
    %p126 = scmp.eq.s32.totalorder %s18, 0
    %p127 = por %p125, %p126
    %s128 = ssub.s32 %s19, %s31
    %s129 = ssub.s32 %s20, %s27
    %s130 = sor.u32 %s128, %s129
    %p131 = scmp.eq.s32.totalorder %s130, 0
    %s133 = sadd.s32 %s132, 1
    %s134 = scalar_select %p131, %s132, %s133
    %p137 = pneg %p131
    %p138 = scmp.eq.s32.totalorder %s12, 3
    %p139 = por %p137, %p138
    %p140 = scmp.ne.s32.totalorder %s132, %s135
    %p141 = scmp.eq.s32.totalorder %s12, 0
    %p142 = por %p140, %p141
    %p143 = scmp.ne.s32.totalorder %s132, %s135
    %p144 = scmp.eq.s32.totalorder %s17, 3
    %p145 = por %p143, %p144
    %p146 = scmp.ne.s32.totalorder %s135, %s136
    %p147 = scmp.eq.s32.totalorder %s17, 0
    %p148 = por %p146, %p147
    %p149 = scmp.ne.s32.totalorder %s135, %s136
    %p150 = scmp.eq.s32.totalorder %s18, 3
    %p151 = por %p149, %p150
    %p153 = scmp.ne.s32.totalorder %s136, %s152
    %p154 = scmp.eq.s32.totalorder %s18, 0
    %p155 = por %p153, %p154
    %p156 = scmp.le.s32.totalorder 1, %s12
    %p157 = scmp.lt.s32.totalorder %s12, 5
    %p158 = pnand %p156, %p157
    %p159 = pneg %p158
    // Predicated region
    $region9: #{attention_block_forward.3} parent=5 // pred_check
      _
    $region10: #{attention_block_forward.3} parent=5 // pred_check_branch
      %161 = sbr.rel (%p158) target = $region12
    $region11: #{attention_block_forward.3} parent=5 // pred_region
      %s162 = ssub.s32 %s12, 1
      // Predicated region
      $region13: #{attention_block_forward.3} parent=11 // pred_check
        %p163 = pneg %p99
      $region14: #{attention_block_forward.3} parent=11 // pred_check_branch
        %165 = sbr.rel (%p163) target = $region16
      $region15: #{attention_block_forward.3} parent=11 // pred_region
        _
      $region16: #{attention_block_forward.3} parent=11 // pred_fallthru
        _
      // Predicated region
      $region17: #{attention_block_forward.3} parent=11 // pred_check
        %p166 = pneg %p120
      $region18: #{attention_block_forward.3} parent=11 // pred_check_branch
        %168 = sbr.rel (%p166) target = $region20
      $region19: #{attention_block_forward.3} parent=11 // pred_region
        _
      $region20: #{attention_block_forward.3} parent=11 // pred_fallthru
        _
    $region12: #{attention_block_forward.3} parent=5 // pred_fallthru
      _
    %p169 = scmp.lt.s32.totalorder %s12, 4
    // Predicated region
    $region21: #{attention_block_forward.3} parent=5 // pred_check
      %p170 = pneg %p169
    $region22: #{attention_block_forward.3} parent=5 // pred_check_branch
      %172 = sbr.rel (%p170) target = $region24
    $region23: #{attention_block_forward.3} parent=5 // pred_region
      // Predicated region
      $region25: #{attention_block_forward.3} parent=23 // pred_check
        %p173 = pneg %p46
      $region26: #{attention_block_forward.3} parent=23 // pred_check_branch
        %175 = sbr.rel (%p173) target = $region28
      $region27: #{attention_block_forward.3} parent=23 // pred_region
        %p176 = scmp.lt.s32.totalorder %s19, 1
        %s177 = scalar_select %p176, %s19, 1
        %p178 = scmp.lt.s32.totalorder %s20, 1
        %s179 = scalar_select %p178, %s20, 1
        %s180 = smul.addr %s177, 2
        %s181 = sadd.s32 %s179, %s180
        %s182 = smul.addr %s181, 4
        %s183 = scalar_lea.vmem %s0, %s182
      $region28: #{attention_block_forward.3} parent=23 // pred_fallthru
        _
      // Predicated region
      $region29: #{attention_block_forward.3} parent=23 // pred_check
        %p184 = pneg %p72
      $region30: #{attention_block_forward.3} parent=23 // pred_check_branch
        %186 = sbr.rel (%p184) target = $region32
      $region31: #{attention_block_forward.3} parent=23 // pred_region
        %p187 = scmp.lt.s32.totalorder %s19, 1
        %s188 = scalar_select %p187, %s19, 1
        %s189 = smul.addr %s188, 8
        %s190 = scalar_lea.vmem %s1, %s189
      $region32: #{attention_block_forward.3} parent=23 // pred_fallthru
        _
    $region24: #{attention_block_forward.3} parent=5 // pred_fallthru
      _
    %p191 = scmp.le.s32.totalorder 1, %s12
    %p192 = scmp.lt.s32.totalorder %s12, 5
    %p193 = pnand %p191, %p192
    %p194 = pneg %p193
    // Predicated region
    $region33: #{attention_block_forward.3} parent=5 // pred_check
      _
    $region34: #{attention_block_forward.3} parent=5 // pred_check_branch
      %196 = sbr.rel (%p193) target = $region36
    $region35: #{attention_block_forward.3} parent=5 // pred_region
      %s197 = ssub.s32 %s12, 1
      %p198 = scmp.lt.s32.totalorder %s21, 1
      %s199 = scalar_select %p198, %s21, 1
      %p200 = scmp.lt.s32.totalorder %s22, 1
      %s201 = scalar_select %p200, %s22, 1
      %s202 = smul.addr %s199, 2
      %s203 = sadd.s32 %s201, %s202
      %s204 = smul.addr %s203, 4
      %s205 = scalar_lea.vmem %s0, %s204
      %p206 = pneg %p52
      %p207 = pneg %p49
      %p208 = scmp.lt.s32.totalorder %s21, 1
      %s209 = scalar_select %p208, %s21, 1
      %s210 = smul.addr %s209, 8
      %s211 = scalar_lea.vmem %s1, %s210
      %p212 = pneg %p78
      %p213 = pneg %p75
      %p214 = pneg %p99
      %p215 = pneg %p96
      %p216 = pneg %p120
      %p217 = pneg %p117
      %p218 = pneg %p148
      %p219 = pneg %p145
      %p220 = scmp.lt.s32.totalorder %s21, 1
      %s221 = scalar_select %p220, %s21, 1
      %p222 = scmp.lt.s32.totalorder %s22, 1
      %s223 = scalar_select %p222, %s22, 1
      %s224 = smul.addr %s221, 2
      %s225 = sadd.s32 %s223, %s224
      %s226 = smul.addr %s225, 8
      %s227 = scalar_lea.vmem %s4, %s226
      %p228 = scmp.lt.s32.totalorder %s21, 1
      %s229 = scalar_select %p228, %s21, 1
      %p230 = scmp.lt.s32.totalorder %s22, 1
      %s231 = scalar_select %p230, %s22, 1
      %s232 = smul.addr %s229, 2
      %s233 = sadd.s32 %s231, %s232
      %s234 = smul.addr %s233, 4
      %s235 = scalar_lea.vmem %s0, %s234
      %p236 = scmp.lt.s32.totalorder %s21, 1
      %s237 = scalar_select %p236, %s21, 1
      %s238 = smul.addr %s237, 8
      %s239 = scalar_lea.vmem %s1, %s238
      %p240 = scmp.lt.s32.totalorder %s21, 1
      %s241 = scalar_select %p240, %s21, 1
      %p242 = scmp.lt.s32.totalorder %s22, 1
      %s243 = scalar_select %p242, %s22, 1
      %s244 = smul.addr %s241, 2
      %s245 = sadd.s32 %s243, %s244
      %s246 = smul.addr %s245, 8
      %s247 = scalar_lea.vmem %s4, %s246
      %v248 = vld [vmem:[%s235] sm:$0xf]
      %v249 = vunpack.c.l.bf16 %v248
      %v250 = vld [vmem:[%s2] sm:$0x1]
      %v251 = vld [vmem:[#allocation2] sm:$0x1]
      %253 = vset.pattern.permute.xlu0 0
      %254 = vperm.xlu0 %253, %v251
      %v255 = vpop.permute.xlu0 %254
      %v257 = vlaneseq
      %v258 = vshrl.u32 %v257, 7
      %v259 = vsub.s32 0, %v258
      %v260 = vrot.slane %v255, %v259
      %vm261 = vcmask 64512
      %v263 = vsel %vm261, %v250, 0
      %265 = vmatprep.subr.mxu0 0.0
      %266 = vmatpush1.msra.mxu0 %v249
      %267 = vmatprep.subr.mxu0 0.0
      %268 = vmatpush1.msra.mxu0 0.0
      %269 = vmatprep.subr.mxu0 0.0
      %270 = vmatpush1.msra.mxu0 0.0
      %271 = vmatprep.subr.mxu0 0.0
      %272 = vmatpush1.msra.mxu0 0.0
      %273 = vmatprep.subr.mxu0 0.0
      %274 = vmatpush1.msra.mxu0 0.0
      %275 = vmatprep.subr.mxu0 0.0
      %276 = vmatpush1.msra.mxu0 0.0
      %277 = vmatprep.subr.mxu0 0.0
      %278 = vmatpush1.msra.mxu0 0.0
      %279 = vmatprep.subr.mxu0 0.0
      %280 = vmatpush1.msra.mxu0 0.0
      %281 = vmatprep.subr.mxu0 0.0
      %282 = vmatpush1.msra.mxu0 0.0
      %283 = vmatprep.subr.mxu0 0.0
      %284 = vmatpush1.msra.mxu0 0.0
      %285 = vmatprep.subr.mxu0 0.0
      %286 = vmatpush1.msra.mxu0 0.0
      %287 = vmatprep.subr.mxu0 0.0
      %288 = vmatpush1.msra.mxu0 0.0
      %289 = vmatprep.subr.mxu0 0.0
      %290 = vmatpush1.msra.mxu0 0.0
      %291 = vmatprep.subr.mxu0 0.0
      %292 = vmatpush1.msra.mxu0 0.0
      %293 = vmatprep.subr.mxu0 0.0
      %294 = vmatpush1.msra.mxu0 0.0
      %295 = vmatprep.subr.mxu0 0.0
      %296 = vmatpush1.msra.mxu0 0.0
      %297 = vmatprep.subr.mxu0 0.0
      %298 = vmatpush1.msra.mxu0 0.0
      %299 = vmatprep.subr.mxu0 0.0
      %300 = vmatpush1.msra.mxu0 0.0
      %301 = vmatprep.subr.mxu0 0.0
      %302 = vmatpush1.msra.mxu0 0.0
      %303 = vmatprep.subr.mxu0 0.0
      %304 = vmatpush1.msra.mxu0 0.0
      %305 = vmatprep.subr.mxu0 0.0
      %306 = vmatpush1.msra.mxu0 0.0
      %307 = vmatprep.subr.mxu0 0.0
      %308 = vmatpush1.msra.mxu0 0.0
      %309 = vmatprep.subr.mxu0 0.0
      %310 = vmatpush1.msra.mxu0 0.0
      %311 = vmatprep.subr.mxu0 0.0
      %312 = vmatpush1.msra.mxu0 0.0
      %313 = vmatprep.subr.mxu0 0.0
      %314 = vmatpush1.msra.mxu0 0.0
      %315 = vmatprep.subr.mxu0 0.0
      %316 = vmatpush1.msra.mxu0 0.0
      %317 = vmatprep.subr.mxu0 0.0
      %318 = vmatpush1.msra.mxu0 0.0
      %319 = vmatprep.subr.mxu0 0.0
      %320 = vmatpush1.msra.mxu0 0.0
      %321 = vmatprep.subr.mxu0 0.0
      %322 = vmatpush1.msra.mxu0 0.0
      %323 = vmatprep.subr.mxu0 0.0
      %324 = vmatpush1.msra.mxu0 0.0
      %325 = vmatprep.subr.mxu0 0.0
      %326 = vmatpush1.msra.mxu0 0.0
      %327 = vmatprep.subr.mxu0 0.0
      %328 = vmatpush1.msra.mxu0 0.0
      %329 = vmatprep.mubr.f32.mxu0 0.0
      %330 = vmatmul.mubr.f32.gmra.mrb[0].mxu0 %v263
      %v331 = vpop.f32.mrb[0].mxu0
      %v332 = vadd.f32 %v260, %v331
      %v333 = vpop.f32.mrb[0].mxu0
      %334 = vdwg.mxu0
      %v335 = vxor.u32 %v332, 2147483648
      %v336 = vmul.f32 %v335, 1.442695
      %v337 = vpow.pop %v336
      %v338 = vadd.f32 %v337, 1.0
      %v339 = vrcp.pop %v338
      %v340 = vmul.f32 1.0, %v339
      %v341 = vld [vmem:[%s239] sm:$0xff]
      %343 = vset.pattern.permute.xlu0 0
      %344 = vperm.xlu0 %343, %v341
      %v345 = vpop.permute.xlu0 %344
      %v347 = vlaneseq
      %v348 = vshrl.u32 %v347, 7
      %v349 = vsub.s32 0, %v348
      %v350 = vrot.slane %v340, %v349
      %v351 = vmax.f32 %v345, %v350
      %v352 = vmul.f32 %v249, %v351
      %353 = vst [vmem:[%s247] sm:$0xff] %v352
      %p354 = scmp.lt.s32.totalorder %s21, 1
      %s355 = scalar_select %p354, %s21, 1
      %p356 = scmp.lt.s32.totalorder %s22, 1
      %s357 = scalar_select %p356, %s22, 1
      %s358 = smul.addr %s355, 2
      %s359 = sadd.s32 %s357, %s358
      %s360 = smul.addr %s359, 8
      %s361 = scalar_lea.vmem %s4, %s360
      // Predicated region
      $region37: #{attention_block_forward.3} parent=35 // pred_check
        %p362 = pneg %p145
      $region38: #{attention_block_forward.3} parent=35 // pred_check_branch
        %364 = sbr.rel (%p362) target = $region40
      $region39: #{attention_block_forward.3} parent=35 // pred_region
        _
      $region40: #{attention_block_forward.3} parent=35 // pred_fallthru
        _
    $region36: #{attention_block_forward.3} parent=5 // pred_fallthru
      _
    %p365 = scmp.le.s32.totalorder 2, %s12
    // Predicated region
    $region41: #{attention_block_forward.3} parent=5 // pred_check
      %p366 = pneg %p365
    $region42: #{attention_block_forward.3} parent=5 // pred_check_branch
      %368 = sbr.rel (%p366) target = $region44
    $region43: #{attention_block_forward.3} parent=5 // pred_region
      %s369 = ssub.s32 %s12, 2
      // Predicated region
      $region45: #{attention_block_forward.3} parent=43 // pred_check
        %p370 = pneg %p151
      $region46: #{attention_block_forward.3} parent=43 // pred_check_branch
        %372 = sbr.rel (%p370) target = $region48
      $region47: #{attention_block_forward.3} parent=43 // pred_region
        %p373 = scmp.lt.s32.totalorder %s23, 1
        %s374 = scalar_select %p373, %s23, 1
        %p375 = scmp.lt.s32.totalorder %s24, 1
        %s376 = scalar_select %p375, %s24, 1
        %s377 = smul.addr %s374, 2
        %s378 = sadd.s32 %s376, %s377
        %s379 = smul.addr %s378, 8
        %s380 = scalar_lea.vmem %s4, %s379
      $region48: #{attention_block_forward.3} parent=43 // pred_fallthru
        _
    $region44: #{attention_block_forward.3} parent=5 // pred_fallthru
      _
  $region6: #{attention_block_forward.3} parent=0 // loop_footer
    %s16 = sadd.s32 1, %s12
  $region7: #{attention_block_forward.3} parent=0 // loop_footer_branch
    %11 = sbr.rel target = $region3
  $region8: #{attention_block_forward.3} parent=0 // loop_exit
    _

// kernel: attention_block_forward.2
$region0: #{attention_block_forward.2}
  #allocation0 [shape = 'u32[]', space=smem, size = 0x4, offset = 0x4, fixed_abs, tag = 'smem constant byte address 0x4 - core index']
  #allocation1 [shape = 'u32[144,128]{1,0:T(1,128)}', space=vmem, size = 0x12000, scoped, tag = 'internal scratch']
  %s0 = inlined_call_operand.vmem [shape: bf16[2,4,16,18], index: 0, kind: input, shape index: {}]
  %s1 = inlined_call_operand.vmem [shape: bf16[2,2,4,2,18], index: 1, kind: input, shape index: {}]
  %s2 = inlined_call_operand.vmem [shape: bf16[8,36], index: 2, kind: input, shape index: {}]
  %s3 = inlined_call_operand.vmem [shape: f32[8,1], index: 3, kind: input, shape index: {}]
  %s4 = inlined_call_operand.vmem [shape: bf16[2,8,256], index: 4, kind: output, shape index: {0}]
  %s5 = inlined_call_operand.vmem [shape: f32[2,2,8,1], index: 5, kind: output, shape index: {1}]
  %6 = xla_tuple %s4, %s5
  %s7 = sld [smem:[#allocation0]]
  $region98: #{attention_block_forward.2} parent=0
    _
  %s9 = ssub.s32 1, %s7
  %s10 = scalar_select 0, %s9, %s7
  $region1: #{attention_block_forward.2} parent=0
    #allocation2 [shape = 'u8[16384]{0}', space=vmem, size = 0x4000, scoped, tag = 'input window, operand 0']
    loop: start=0, step=1, limit=6
    $region2: #{attention_block_forward.2} parent=1 // loop_pre_header
      _
    $region3: #{attention_block_forward.2} parent=1 // loop_header
      %s12 = sphi 0, %s16
      %p13 = scmp.ge.s32.totalorder %s12, 6
      %s19 = sphi 0, %s31
      %s20 = sphi 0, %s27
      %s21 = sphi 0, %s19
      %s22 = sphi 0, %s20
      %s23 = sphi 0, %s21
      %s24 = sphi 0, %s22
      %s36 = sphi 0, %s38
      %s39 = sphi 0, %s36
      %s40 = sphi 0, %s39
      %s56 = sphi 0, %s40
      %s64 = sphi 0, %s66
      %s67 = sphi 0, %s64
      %s68 = sphi 0, %s67
      %s84 = sphi 0, %s68
      %s88 = sphi 0, %s88
      %s90 = sphi 0, %s88
      %s91 = sphi 0, %s90
      %s105 = sphi 0, %s91
      %s109 = sphi 0, %s109
      %s111 = sphi 0, %s109
      %s112 = sphi 0, %s111
      %s126 = sphi 0, %s112
      %s134 = sphi 0, %s136
      %s137 = sphi 0, %s134
      %s138 = sphi 0, %s137
      %s154 = sphi 0, %s138
      %s162 = sphi 0, %s164
      %s165 = sphi 0, %s162
      %s166 = sphi 0, %s165
      %s182 = sphi 0, %s166
    $region4: #{attention_block_forward.2} parent=1 // loop_header_branch
      %15 = sbr.rel (%p13) target = $region8
    $region5: #{attention_block_forward.2} parent=1 // loop_body
      %s17 = ssub.s32 %s12, 1
      %s18 = ssub.s32 %s12, 2
      %s25 = sadd.s32 1, %s20
      %p26 = scmp.ge.s32.totalorder %s25, 2
      %s27 = scalar_select %p26, 0, %s25
      %s28 = sadd.s32 1, %s19
      %s29 = scalar_select %p26, %s28, %s19
      %p30 = scmp.ge.s32.totalorder %s29, 2
      %s31 = scalar_select %p30, 0, %s29
      %s32 = ssub.s32 %s19, %s31
      %s33 = ssub.s32 %s20, %s27
      %s34 = sor.u32 %s32, %s33
      %p35 = scmp.eq.s32.totalorder %s34, 0
      %s37 = sadd.s32 %s36, 1
      %s38 = scalar_select %p35, %s36, %s37
      %p41 = pneg %p35
      %p42 = scmp.eq.s32.totalorder %s12, 3
      %p43 = por %p41, %p42
      %p44 = scmp.ne.s32.totalorder %s36, %s39
      %p45 = scmp.eq.s32.totalorder %s12, 0
      %p46 = por %p44, %p45
      %p47 = scmp.ne.s32.totalorder %s36, %s39
      %p48 = scmp.eq.s32.totalorder %s17, 3
      %p49 = por %p47, %p48
      %p50 = scmp.ne.s32.totalorder %s39, %s40
      %p51 = scmp.eq.s32.totalorder %s17, 0
      %p52 = por %p50, %p51
      %p53 = scmp.ne.s32.totalorder %s39, %s40
      %p54 = scmp.eq.s32.totalorder %s18, 3
      %p55 = por %p53, %p54
      %p57 = scmp.ne.s32.totalorder %s40, %s56
      %p58 = scmp.eq.s32.totalorder %s18, 0
      %p59 = por %p57, %p58
      %s60 = ssub.s32 %s19, %s31
      %s61 = ssub.s32 %s20, %s27
      %s62 = sor.u32 %s60, %s61
      %p63 = scmp.eq.s32.totalorder %s62, 0
      %s65 = sadd.s32 %s64, 1
      %s66 = scalar_select %p63, %s64, %s65
      %p69 = pneg %p63
      %p70 = scmp.eq.s32.totalorder %s12, 3
      %p71 = por %p69, %p70
      %p72 = scmp.ne.s32.totalorder %s64, %s67
      %p73 = scmp.eq.s32.totalorder %s12, 0
      %p74 = por %p72, %p73
      %p75 = scmp.ne.s32.totalorder %s64, %s67
      %p76 = scmp.eq.s32.totalorder %s17, 3
      %p77 = por %p75, %p76
      %p78 = scmp.ne.s32.totalorder %s67, %s68
      %p79 = scmp.eq.s32.totalorder %s17, 0
      %p80 = por %p78, %p79
      %p81 = scmp.ne.s32.totalorder %s67, %s68
      %p82 = scmp.eq.s32.totalorder %s18, 3
      %p83 = por %p81, %p82
      %p85 = scmp.ne.s32.totalorder %s68, %s84
      %p86 = scmp.eq.s32.totalorder %s18, 0
      %p87 = por %p85, %p86
      %s89 = sadd.s32 %s88, 1
      %p92 = scmp.eq.s32.totalorder %s12, 3
      %p93 = scmp.ne.s32.totalorder %s88, %s90
      %p94 = scmp.eq.s32.totalorder %s12, 0
      %p95 = por %p93, %p94
      %p96 = scmp.ne.s32.totalorder %s88, %s90
      %p97 = scmp.eq.s32.totalorder %s17, 3
      %p98 = por %p96, %p97
      %p99 = scmp.ne.s32.totalorder %s90, %s91
      %p100 = scmp.eq.s32.totalorder %s17, 0
      %p101 = por %p99, %p100
      %p102 = scmp.ne.s32.totalorder %s90, %s91
      %p103 = scmp.eq.s32.totalorder %s18, 3
      %p104 = por %p102, %p103
      %p106 = scmp.ne.s32.totalorder %s91, %s105
      %p107 = scmp.eq.s32.totalorder %s18, 0
      %p108 = por %p106, %p107
      %s110 = sadd.s32 %s109, 1
      %p113 = scmp.eq.s32.totalorder %s12, 3
      %p114 = scmp.ne.s32.totalorder %s109, %s111
      %p115 = scmp.eq.s32.totalorder %s12, 0
      %p116 = por %p114, %p115
      %p117 = scmp.ne.s32.totalorder %s109, %s111
      %p118 = scmp.eq.s32.totalorder %s17, 3
      %p119 = por %p117, %p118
      %p120 = scmp.ne.s32.totalorder %s111, %s112
      %p121 = scmp.eq.s32.totalorder %s17, 0
      %p122 = por %p120, %p121
      %p123 = scmp.ne.s32.totalorder %s111, %s112
      %p124 = scmp.eq.s32.totalorder %s18, 3
      %p125 = por %p123, %p124
      %p127 = scmp.ne.s32.totalorder %s112, %s126
      %p128 = scmp.eq.s32.totalorder %s18, 0
      %p129 = por %p127, %p128
      %s130 = ssub.s32 %s19, %s31
      %s131 = ssub.s32 %s20, %s27
      %s132 = sor.u32 %s130, %s131
      %p133 = scmp.eq.s32.totalorder %s132, 0
      %s135 = sadd.s32 %s134, 1
      %s136 = scalar_select %p133, %s134, %s135
      %p139 = pneg %p133
      %p140 = scmp.eq.s32.totalorder %s12, 3
      %p141 = por %p139, %p140
      %p142 = scmp.ne.s32.totalorder %s134, %s137
      %p143 = scmp.eq.s32.totalorder %s12, 0
      %p144 = por %p142, %p143
      %p145 = scmp.ne.s32.totalorder %s134, %s137
      %p146 = scmp.eq.s32.totalorder %s17, 3
      %p147 = por %p145, %p146
      %p148 = scmp.ne.s32.totalorder %s137, %s138
      %p149 = scmp.eq.s32.totalorder %s17, 0
      %p150 = por %p148, %p149
      %p151 = scmp.ne.s32.totalorder %s137, %s138
      %p152 = scmp.eq.s32.totalorder %s18, 3
      %p153 = por %p151, %p152
      %p155 = scmp.ne.s32.totalorder %s138, %s154
      %p156 = scmp.eq.s32.totalorder %s18, 0
      %p157 = por %p155, %p156
      %s158 = ssub.s32 %s19, %s31
      %s159 = ssub.s32 %s20, %s27
      %s160 = sor.u32 %s158, %s159
      %p161 = scmp.eq.s32.totalorder %s160, 0
      %s163 = sadd.s32 %s162, 1
      %s164 = scalar_select %p161, %s162, %s163
      %p167 = pneg %p161
      %p168 = scmp.eq.s32.totalorder %s12, 3
      %p169 = por %p167, %p168
      %p170 = scmp.ne.s32.totalorder %s162, %s165
      %p171 = scmp.eq.s32.totalorder %s12, 0
      %p172 = por %p170, %p171
      %p173 = scmp.ne.s32.totalorder %s162, %s165
      %p174 = scmp.eq.s32.totalorder %s17, 3
      %p175 = por %p173, %p174
      %p176 = scmp.ne.s32.totalorder %s165, %s166
      %p177 = scmp.eq.s32.totalorder %s17, 0
      %p178 = por %p176, %p177
      %p179 = scmp.ne.s32.totalorder %s165, %s166
      %p180 = scmp.eq.s32.totalorder %s18, 3
      %p181 = por %p179, %p180
      %p183 = scmp.ne.s32.totalorder %s166, %s182
      %p184 = scmp.eq.s32.totalorder %s18, 0
      %p185 = por %p183, %p184
      %p186 = scmp.le.s32.totalorder 1, %s12
      %p187 = scmp.lt.s32.totalorder %s12, 5
      %p188 = pnand %p186, %p187
      %p189 = pneg %p188
      // Predicated region
      $region9: #{attention_block_forward.2} parent=5 // pred_check
        _
      $region10: #{attention_block_forward.2} parent=5 // pred_check_branch
        %191 = sbr.rel (%p188) target = $region12
      $region11: #{attention_block_forward.2} parent=5 // pred_region
        %s192 = ssub.s32 %s12, 1
        // Predicated region
        $region13: #{attention_block_forward.2} parent=11 // pred_check
          %p193 = pneg %p101
        $region14: #{attention_block_forward.2} parent=11 // pred_check_branch
          %195 = sbr.rel (%p193) target = $region16
        $region15: #{attention_block_forward.2} parent=11 // pred_region
          _
        $region16: #{attention_block_forward.2} parent=11 // pred_fallthru
          _
        // Predicated region
        $region17: #{attention_block_forward.2} parent=11 // pred_check
          %p196 = pneg %p122
        $region18: #{attention_block_forward.2} parent=11 // pred_check_branch
          %198 = sbr.rel (%p196) target = $region20
        $region19: #{attention_block_forward.2} parent=11 // pred_region
          _
        $region20: #{attention_block_forward.2} parent=11 // pred_fallthru
          _
      $region12: #{attention_block_forward.2} parent=5 // pred_fallthru
        _
      %p199 = scmp.lt.s32.totalorder %s12, 4
      // Predicated region
      $region21: #{attention_block_forward.2} parent=5 // pred_check
        %p200 = pneg %p199
      $region22: #{attention_block_forward.2} parent=5 // pred_check_branch
        %202 = sbr.rel (%p200) target = $region24
      $region23: #{attention_block_forward.2} parent=5 // pred_region
        // Predicated region
        $region25: #{attention_block_forward.2} parent=23 // pred_check
          %p203 = pneg %p46
        $region26: #{attention_block_forward.2} parent=23 // pred_check_branch
          %205 = sbr.rel (%p203) target = $region28
        $region27: #{attention_block_forward.2} parent=23 // pred_region
          %s206 = sand.u32 %s36, 1
          %s207 = sand.u32 %s36, 1
          %s208 = smul.addr %s207, 16
          %s209 = scalar_lea.vmem [#allocation2], %s208
          %s210 = smul.addr %s19, 8
          %s211 = sadd.s32 %s20, %s210
          %s212 = smul.addr %s211, 4
          %s213 = scalar_lea.vmem %s0, %s212
          // Predicated region
          $region29: #{attention_block_forward.2} parent=27 // pred_check
            _
          $region30: #{attention_block_forward.2} parent=27 // pred_check_branch
            %215 = sbr.rel (0) target = $region32
          $region31: #{attention_block_forward.2} parent=27 // pred_region
            // Predicated region
            $region33: #{attention_block_forward.2} parent=31 // pred_check
              _
            $region34: #{attention_block_forward.2} parent=31 // pred_check_branch
              %217 = sbr.rel target = $region36
            $region35: #{attention_block_forward.2} parent=31 // pred_region
              // Predicated region
              $region48: #{attention_block_forward.2} parent=35 // pred_check
                _
              $region49: #{attention_block_forward.2} parent=35 // pred_check_branch
                %238 = sbr.rel (0) target = $region51
              $region50: #{attention_block_forward.2} parent=35 // pred_region
                loop: start=0, step=1, limit=1
                $region52: #{attention_block_forward.2} parent=50 // loop_pre_header
                  _
                $region53: #{attention_block_forward.2} parent=50 // loop_header
                  %s240 = sphi 0, %s244
                  %p241 = scmp.ge.s32.totalorder %s240, 1
                  %s245 = sphi %s213, %s213
                  %s246 = sphi %s209, %s209
                $region54: #{attention_block_forward.2} parent=50 // loop_header_branch
                  %243 = sbr.rel (%p241) target = $region58
                $region55: #{attention_block_forward.2} parent=50 // loop_body
                  _
                $region56: #{attention_block_forward.2} parent=50 // loop_footer
                  %s244 = sadd.s32 1, %s240
                $region57: #{attention_block_forward.2} parent=50 // loop_footer_branch
                  %239 = sbr.rel target = $region53
                $region58: #{attention_block_forward.2} parent=50 // loop_exit
                  _
                loop: start=0, step=1, limit=1
                $region59: #{attention_block_forward.2} parent=50 // loop_pre_header
                  _
                $region60: #{attention_block_forward.2} parent=50 // loop_header
                  %s249 = sphi 0, %s253
                  %p250 = scmp.ge.s32.totalorder %s249, 1
                  %s254 = sphi %s213, %s213
                  %s255 = sphi %s209, %s209
                $region61: #{attention_block_forward.2} parent=50 // loop_header_branch
                  %252 = sbr.rel (%p250) target = $region65
                $region62: #{attention_block_forward.2} parent=50 // loop_body
                  %v256 = vld [vmem:[%s254] sm:$0xf]
                  %257 = vst [vmem:[%s255] sm:$0xf] %v256
                  %v258 = vld [vmem:[%s254 + $0x8] sm:$0xf]
                  %259 = vst [vmem:[%s255 + $0x4] sm:$0xf] %v258
                  %v260 = vld [vmem:[%s254 + $0x10] sm:$0xf]
                  %261 = vst [vmem:[%s255 + $0x8] sm:$0xf] %v260
                  %v262 = vld [vmem:[%s254 + $0x18] sm:$0xf]
                  %263 = vst [vmem:[%s255 + $0xc] sm:$0xf] %v262
                $region63: #{attention_block_forward.2} parent=50 // loop_footer
                  %s253 = sadd.s32 1, %s249
                $region64: #{attention_block_forward.2} parent=50 // loop_footer_branch
                  %248 = sbr.rel target = $region60
                $region65: #{attention_block_forward.2} parent=50 // loop_exit
                  _
              $region51: #{attention_block_forward.2} parent=35 // pred_fallthru
                _
            $region36: #{attention_block_forward.2} parent=31 // pred_fallthru
              _
            // Predicated region
            $region37: #{attention_block_forward.2} parent=31 // pred_check
              _
            $region38: #{attention_block_forward.2} parent=31 // pred_check_branch
              %219 = sbr.rel (0) target = $region40
            $region39: #{attention_block_forward.2} parent=31 // pred_region
              loop: start=0, step=1, limit=1
              $region41: #{attention_block_forward.2} parent=39 // loop_pre_header
                _
              $region42: #{attention_block_forward.2} parent=39 // loop_header
                %s222 = sphi 0, %s226
                %p223 = scmp.ge.s32.totalorder %s222, 1
                %s227 = sphi %s213, %s213
                %s228 = sphi %s209, %s209
              $region43: #{attention_block_forward.2} parent=39 // loop_header_branch
                %225 = sbr.rel (%p223) target = $region47
              $region44: #{attention_block_forward.2} parent=39 // loop_body
                %v229 = vld [vmem:[%s227] sm:$0xf]
                %230 = vst [vmem:[%s228] sm:$0xf] %v229
                %v231 = vld [vmem:[%s227 + $0x8] sm:$0xf]
                %232 = vst [vmem:[%s228 + $0x4] sm:$0xf] %v231
                %v233 = vld [vmem:[%s227 + $0x10] sm:$0xf]
                %234 = vst [vmem:[%s228 + $0x8] sm:$0xf] %v233
                %v235 = vld [vmem:[%s227 + $0x18] sm:$0xf]
                %236 = vst [vmem:[%s228 + $0xc] sm:$0xf] %v235
              $region45: #{attention_block_forward.2} parent=39 // loop_footer
                %s226 = sadd.s32 1, %s222
              $region46: #{attention_block_forward.2} parent=39 // loop_footer_branch
                %221 = sbr.rel target = $region42
              $region47: #{attention_block_forward.2} parent=39 // loop_exit
                _
            $region40: #{attention_block_forward.2} parent=31 // pred_fallthru
              _
          $region32: #{attention_block_forward.2} parent=27 // pred_fallthru
            _
          %264 = vnop
        $region28: #{attention_block_forward.2} parent=23 // pred_fallthru
          _
        // Predicated region
        $region66: #{attention_block_forward.2} parent=23 // pred_check
          %p265 = pneg %p74
        $region67: #{attention_block_forward.2} parent=23 // pred_check_branch
          %267 = sbr.rel (%p265) target = $region69
        $region68: #{attention_block_forward.2} parent=23 // pred_region
          %p268 = scmp.lt.s32.totalorder %s19, 1
          %s269 = scalar_select %p268, %s19, 1
          %p270 = scmp.lt.s32.totalorder %s20, 1
          %s271 = scalar_select %p270, %s20, 1
          %s272 = smul.addr %s271, 4
          %s273 = smul.addr %s269, 8
          %s274 = sadd.s32 %s272, %s273
          %s275 = scalar_lea.vmem %s1, %s274
        $region69: #{attention_block_forward.2} parent=23 // pred_fallthru
          _
      $region24: #{attention_block_forward.2} parent=5 // pred_fallthru
        _
      %p276 = scmp.le.s32.totalorder 1, %s12
      %p277 = scmp.lt.s32.totalorder %s12, 5
      %p278 = pnand %p276, %p277
      %p279 = pneg %p278
      // Predicated region
      $region70: #{attention_block_forward.2} parent=5 // pred_check
        _
      $region71: #{attention_block_forward.2} parent=5 // pred_check_branch
        %281 = sbr.rel (%p278) target = $region73
      $region72: #{attention_block_forward.2} parent=5 // pred_region
        %s282 = ssub.s32 %s12, 1
        %s283 = sand.u32 %s39, 1
        %s284 = sand.u32 %s39, 1
        %s285 = smul.addr %s284, 16
        %s286 = scalar_lea.vmem [#allocation2], %s285
        // Predicated region
        $region74: #{attention_block_forward.2} parent=72 // pred_check
          %p287 = pneg %p52
        $region75: #{attention_block_forward.2} parent=72 // pred_check_branch
          %289 = sbr.rel (%p287) target = $region77
        $region76: #{attention_block_forward.2} parent=72 // pred_region
          _
        $region77: #{attention_block_forward.2} parent=72 // pred_fallthru
          _
        %s290 = sand.u32 %s39, 1
        %s291 = sand.u32 %s39, 1
        %s292 = smul.addr %s291, 16
        %s293 = scalar_lea.vmem [#allocation2], %s292
        %p294 = pneg %p52
        %p295 = pneg %p49
        %p296 = scmp.lt.s32.totalorder %s21, 1
        %s297 = scalar_select %p296, %s21, 1
        %p298 = scmp.lt.s32.totalorder %s22, 1
        %s299 = scalar_select %p298, %s22, 1
        %s300 = smul.addr %s299, 4
        %s301 = smul.addr %s297, 8
        %s302 = sadd.s32 %s300, %s301
        %s303 = scalar_lea.vmem %s1, %s302
        %p304 = pneg %p80
        %p305 = pneg %p77
        %p306 = pneg %p101
        %p307 = pneg %p98
        %p308 = pneg %p122
        %p309 = pneg %p119
        %p310 = pneg %p150
        %p311 = pneg %p147
        %p312 = scmp.lt.s32.totalorder %s21, 1
        %s313 = scalar_select %p312, %s21, 1
        %p314 = scmp.lt.s32.totalorder %s22, 1
        %s315 = scalar_select %p314, %s22, 1
        %s316 = smul.addr %s313, 2
        %s317 = sadd.s32 %s315, %s316
        %s318 = smul.addr %s317, 4
        %s319 = scalar_lea.vmem %s4, %s318
        %p320 = pneg %p178
        %p321 = pneg %p175
        %p322 = scmp.lt.s32.totalorder %s21, 1
        %s323 = scalar_select %p322, %s21, 1
        %p324 = scmp.lt.s32.totalorder %s22, 1
        %s325 = scalar_select %p324, %s22, 1
        %s326 = smul.addr %s323, 2
        %s327 = sadd.s32 %s325, %s326
        %s328 = smul.addr %s327, 8
        %s329 = scalar_lea.vmem %s5, %s328
        %p330 = scmp.lt.s32.totalorder %s21, 1
        %s331 = scalar_select %p330, %s21, 1
        %p332 = scmp.lt.s32.totalorder %s22, 1
        %s333 = scalar_select %p332, %s22, 1
        %s334 = smul.addr %s333, 4
        %s335 = smul.addr %s331, 8
        %s336 = sadd.s32 %s334, %s335
        %s337 = scalar_lea.vmem %s1, %s336
        %p338 = scmp.lt.s32.totalorder %s21, 1
        %s339 = scalar_select %p338, %s21, 1
        %p340 = scmp.lt.s32.totalorder %s22, 1
        %s341 = scalar_select %p340, %s22, 1
        %s342 = smul.addr %s339, 2
        %s343 = sadd.s32 %s341, %s342
        %s344 = smul.addr %s343, 4
        %s345 = scalar_lea.vmem %s4, %s344
        %p346 = scmp.lt.s32.totalorder %s21, 1
        %s347 = scalar_select %p346, %s21, 1
        %p348 = scmp.lt.s32.totalorder %s22, 1
        %s349 = scalar_select %p348, %s22, 1
        %s350 = smul.addr %s347, 2
        %s351 = sadd.s32 %s349, %s350
        %s352 = smul.addr %s351, 8
        %s353 = scalar_lea.vmem %s5, %s352
        %v355 = vld [vmem:[%s286] sm:$0xf]
        %v356 = vld [vmem:[%s286 + $0x4] sm:$0xf]
        %v357 = vld [vmem:[%s286 + $0x8] sm:$0xf]
        %v358 = vld [vmem:[%s286 + $0xc] sm:$0xf]
        %v359 = vld [vmem:[%s337] sm:$0x1]
        %v360 = vld [vmem:[%s337 + $0x1] sm:$0x1]
        %v361 = vld [vmem:[%s337 + $0x2] sm:$0x1]
        %v362 = vld [vmem:[%s337 + $0x3] sm:$0x1]
        %v367 = vunpack.c.l.b16 %v355
        %v368 = vunpack.c.l.b16 %v356
        %v369 = vunpack.c.l.b16 %v357
        %v370 = vunpack.c.l.b16 %v358
        %v371 = vpack.c.b16 %v367, %v367
        %v372 = vpack.c.b16 %v368, %v368
        %v373 = vpack.c.b16 %v369, %v369
        %v374 = vpack.c.b16 %v370, %v370
        %v376 = vshrl.u32 %v371, 16
        %v378 = vrot.slane %v376, 7
        %v379 = vshll.u32 %v371, 16
        %v381 = vor.u32 %v378, %v379
        %v383 = vshrl.u32 %v372, 16
        %v385 = vrot.slane %v383, 7
        %v386 = vshll.u32 %v372, 16
        %v388 = vor.u32 %v385, %v386
        %v390 = vshrl.u32 %v373, 16
        %v392 = vrot.slane %v390, 7
        %v393 = vshll.u32 %v373, 16
        %v395 = vor.u32 %v392, %v393
        %v397 = vshrl.u32 %v374, 16
        %v399 = vrot.slane %v397, 7
        %v400 = vshll.u32 %v374, 16
        %v402 = vor.u32 %v399, %v400
        %vm407 = vcmask 1040384
        %vm408 = vsmask.f32 256
        %vm409 = vmand %vm407, %vm408
        %v410 = vsel %vm409, %v359, %v381
        %v411 = vsel %vm409, %v360, %v388
        %v412 = vsel %vm409, %v361, %v395
        %v413 = vsel %vm409, %v362, %v402
        %v414 = vrot.slane %v379, 1
        %v415 = vor.u32 %v376, %v414
        %v416 = vrot.slane %v386, 1
        %v417 = vor.u32 %v383, %v416
        %v418 = vrot.slane %v393, 1
        %v419 = vor.u32 %v390, %v418
        %v420 = vrot.slane %v400, 1
        %v421 = vor.u32 %v397, %v420
        %v430 = vcombine.low %v359, %v359
        %v432 = vunpack.c.l.s4 1966171168
        %v433 = vunpack.c.0.s8 %v432
        %v434 = vlaneseq
        %v435 = vshrl.u32 %v434, 7
        %v436 = vsub.s32 %v433, %v435
        %v437 = vrot.slane %v430, %v436
        %v438 = vcombine.low %v437, %v437
        %v440 = vunpack.c.l.s4 1966171168
        %v441 = vunpack.c.0.s8 %v440
        %v442 = vlaneseq
        %v443 = vshrl.u32 %v442, 7
        %v444 = vsub.s32 %v441, %v443
        %v445 = vrot.slane %v438, %v444
        %v446 = vcombine.low %v360, %v360
        %v448 = vunpack.c.l.s4 1966171168
        %v449 = vunpack.c.0.s8 %v448
        %v450 = vlaneseq
        %v451 = vshrl.u32 %v450, 7
        %v452 = vsub.s32 %v449, %v451
        %v453 = vrot.slane %v446, %v452
        %v454 = vcombine.low %v453, %v453
        %v456 = vunpack.c.l.s4 1966171168
        %v457 = vunpack.c.0.s8 %v456
        %v458 = vlaneseq
        %v459 = vshrl.u32 %v458, 7
        %v460 = vsub.s32 %v457, %v459
        %v461 = vrot.slane %v454, %v460
        %v462 = vcombine.low %v361, %v361
        %v464 = vunpack.c.l.s4 1966171168
        %v465 = vunpack.c.0.s8 %v464
        %v466 = vlaneseq
        %v467 = vshrl.u32 %v466, 7
        %v468 = vsub.s32 %v465, %v467
        %v469 = vrot.slane %v462, %v468
        %v470 = vcombine.low %v469, %v469
        %v472 = vunpack.c.l.s4 1966171168
        %v473 = vunpack.c.0.s8 %v472
        %v474 = vlaneseq
        %v475 = vshrl.u32 %v474, 7
        %v476 = vsub.s32 %v473, %v475
        %v477 = vrot.slane %v470, %v476
        %v478 = vcombine.low %v362, %v362
        %v480 = vunpack.c.l.s4 1966171168
        %v481 = vunpack.c.0.s8 %v480
        %v482 = vlaneseq
        %v483 = vshrl.u32 %v482, 7
        %v484 = vsub.s32 %v481, %v483
        %v485 = vrot.slane %v478, %v484
        %v486 = vcombine.low %v485, %v485
        %v488 = vunpack.c.l.s4 1966171168
        %v489 = vunpack.c.0.s8 %v488
        %v490 = vlaneseq
        %v491 = vshrl.u32 %v490, 7
        %v492 = vsub.s32 %v489, %v491
        %v493 = vrot.slane %v486, %v492
        %vm498 = vcmask 1043456
        %vm499 = vsmask.f32 3328
        %vm500 = vmand %vm498, %vm499
        %v501 = vsel %vm500, %v415, %v445
        %v502 = vsel %vm500, %v417, %v461
        %v503 = vsel %vm500, %v419, %v477
        %v504 = vsel %vm500, %v421, %v493
        %v506 = vunpack.c.l.s4 1983009808
        %v507 = vunpack.c.0.s8 %v506
        %v508 = vlaneseq
        %v509 = vshrl.u32 %v508, 7
        %v510 = vsub.s32 %v507, %v509
        %v511 = vrot.slane %v410, %v510
        %v513 = vunpack.c.l.s4 1983009808
        %v514 = vunpack.c.0.s8 %v513
        %v515 = vlaneseq
        %v516 = vshrl.u32 %v515, 7
        %v517 = vsub.s32 %v514, %v516
        %v518 = vrot.slane %v412, %v517
        %v519 = vcombine.low %v511, %v518
        %v520 = vcombine.high %v511, %v518
        %v522 = vunpack.c.l.s4 1934713408
        %v523 = vunpack.c.0.s8 %v522
        %v524 = vlaneseq
        %v525 = vshrl.u32 %v524, 7
        %v526 = vsub.s32 %v523, %v525
        %v527 = vrot.slane %v519, %v526
        %v529 = vunpack.c.l.s4 1934713408
        %v530 = vunpack.c.0.s8 %v529
        %v531 = vlaneseq
        %v532 = vshrl.u32 %v531, 7
        %v533 = vsub.s32 %v530, %v532
        %v534 = vrot.slane %v520, %v533
        %v535 = vcombine.high %v527, 0
        %v536 = vcombine.high %v534, 0
        %v538 = vunpack.c.l.s4 1983009808
        %v539 = vunpack.c.0.s8 %v538
        %v540 = vlaneseq
        %v541 = vshrl.u32 %v540, 7
        %v542 = vsub.s32 %v539, %v541
        %v543 = vrot.slane %v411, %v542
        %v545 = vunpack.c.l.s4 1983009808
        %v546 = vunpack.c.0.s8 %v545
        %v547 = vlaneseq
        %v548 = vshrl.u32 %v547, 7
        %v549 = vsub.s32 %v546, %v548
        %v550 = vrot.slane %v413, %v549
        %v551 = vcombine.low %v543, %v550
        %v552 = vcombine.high %v543, %v550
        %v554 = vunpack.c.l.s4 1934713408
        %v555 = vunpack.c.0.s8 %v554
        %v556 = vlaneseq
        %v557 = vshrl.u32 %v556, 7
        %v558 = vsub.s32 %v555, %v557
        %v559 = vrot.slane %v551, %v558
        %v561 = vunpack.c.l.s4 1934713408
        %v562 = vunpack.c.0.s8 %v561
        %v563 = vlaneseq
        %v564 = vshrl.u32 %v563, 7
        %v565 = vsub.s32 %v562, %v564
        %v566 = vrot.slane %v552, %v565
        %v567 = vcombine.high %v559, 0
        %v568 = vcombine.high %v566, 0
        %v571 = vpack.i.b16 %v559, %v527
        %v572 = vshrl.u32 %v527, 16
        %v573 = vshrl.u32 %v559, 16
        %v574 = vpack.i.b16 %v573, %v572
        %v577 = vpack.i.b16 %v567, %v535
        %v578 = vshrl.u32 %v535, 16
        %v579 = vshrl.u32 %v567, 16
        %v580 = vpack.i.b16 %v579, %v578
        %v583 = vpack.i.b16 %v566, %v534
        %v584 = vshrl.u32 %v534, 16
        %v585 = vshrl.u32 %v566, 16
        %v586 = vpack.i.b16 %v585, %v584
        %v589 = vpack.i.b16 %v568, %v536
        %v590 = vshrl.u32 %v536, 16
        %v591 = vshrl.u32 %v568, 16
        %v592 = vpack.i.b16 %v591, %v590
        %593 = vrot.lane.b32.xlu0 %v574, 16
        %v594 = vpop.permute.xlu0 %593
        %595 = vrot.lane.b32.xlu0 %v577, 32
        %v596 = vpop.permute.xlu0 %595
        %597 = vrot.lane.b32.xlu0 %v580, 48
        %v598 = vpop.permute.xlu0 %597
        %599 = vrot.lane.b32.xlu0 %v583, 64
        %v600 = vpop.permute.xlu0 %599
        %601 = vrot.lane.b32.xlu0 %v586, 80
        %v602 = vpop.permute.xlu0 %601
        %603 = vrot.lane.b32.xlu0 %v589, 96
        %v604 = vpop.permute.xlu0 %603
        %605 = vrot.lane.b32.xlu0 %v592, 112
        %v606 = vpop.permute.xlu0 %605
        %vm607 = vcmask 130048
        %v610 = vsel %vm607, %v571, %v594
        %vm611 = vcmask 261120
        %v613 = vsel %vm611, %v610, %v596
        %vm614 = vcmask 392192
        %v616 = vsel %vm614, %v613, %v598
        %vm617 = vcmask 523264
        %v619 = vsel %vm617, %v616, %v600
        %vm620 = vcmask 654336
        %v622 = vsel %vm620, %v619, %v602
        %vm623 = vcmask 785408
        %v625 = vsel %vm623, %v622, %v604
        %vm626 = vcmask 916480
        %v628 = vsel %vm626, %v625, %v606
        %633 = vrot.lane.b32.xlu0 %v410, 127
        %v634 = vpop.permute.xlu0 %633
        %635 = vrot.lane.b32.xlu0 %v411, 127
        %v636 = vpop.permute.xlu0 %635
        %637 = vrot.lane.b32.xlu0 %v412, 127
        %v638 = vpop.permute.xlu0 %637
        %639 = vrot.lane.b32.xlu0 %v413, 127
        %v640 = vpop.permute.xlu0 %639
        %v643 = vunpack.c.l.s4 1983009808
        %v644 = vunpack.c.0.s8 %v643
        %v645 = vlaneseq
        %v646 = vshrl.u32 %v645, 7
        %v647 = vsub.s32 %v644, %v646
        %v648 = vrot.slane %v634, %v647
        %v651 = vunpack.c.l.s4 1983009808
        %v652 = vunpack.c.0.s8 %v651
        %v653 = vlaneseq
        %v654 = vshrl.u32 %v653, 7
        %v655 = vsub.s32 %v652, %v654
        %v656 = vrot.slane %v638, %v655
        %v657 = vcombine.low %v648, %v656
        %v658 = vcombine.high %v648, %v656
        %v660 = vunpack.c.l.s4 1934713408
        %v661 = vunpack.c.0.s8 %v660
        %v662 = vlaneseq
        %v663 = vshrl.u32 %v662, 7
        %v664 = vsub.s32 %v661, %v663
        %v665 = vrot.slane %v657, %v664
        %v667 = vunpack.c.l.s4 1934713408
        %v668 = vunpack.c.0.s8 %v667
        %v669 = vlaneseq
        %v670 = vshrl.u32 %v669, 7
        %v671 = vsub.s32 %v668, %v670
        %v672 = vrot.slane %v658, %v671
        %v673 = vcombine.high %v665, 0
        %v674 = vcombine.high %v672, 0
        %v677 = vunpack.c.l.s4 1983009808
        %v678 = vunpack.c.0.s8 %v677
        %v679 = vlaneseq
        %v680 = vshrl.u32 %v679, 7
        %v681 = vsub.s32 %v678, %v680
        %v682 = vrot.slane %v636, %v681
        %v685 = vunpack.c.l.s4 1983009808
        %v686 = vunpack.c.0.s8 %v685
        %v687 = vlaneseq
        %v688 = vshrl.u32 %v687, 7
        %v689 = vsub.s32 %v686, %v688
        %v690 = vrot.slane %v640, %v689
        %v691 = vcombine.low %v682, %v690
        %v692 = vcombine.high %v682, %v690
        %v694 = vunpack.c.l.s4 1934713408
        %v695 = vunpack.c.0.s8 %v694
        %v696 = vlaneseq
        %v697 = vshrl.u32 %v696, 7
        %v698 = vsub.s32 %v695, %v697
        %v699 = vrot.slane %v691, %v698
        %v701 = vunpack.c.l.s4 1934713408
        %v702 = vunpack.c.0.s8 %v701
        %v703 = vlaneseq
        %v704 = vshrl.u32 %v703, 7
        %v705 = vsub.s32 %v702, %v704
        %v706 = vrot.slane %v692, %v705
        %v707 = vcombine.high %v699, 0
        %v708 = vcombine.high %v706, 0
        %v711 = vpack.i.b16 %v699, %v665
        %v712 = vshrl.u32 %v665, 16
        %v713 = vshrl.u32 %v699, 16
        %v714 = vpack.i.b16 %v713, %v712
        %v717 = vpack.i.b16 %v707, %v673
        %v718 = vshrl.u32 %v673, 16
        %v719 = vshrl.u32 %v707, 16
        %v720 = vpack.i.b16 %v719, %v718
        %v723 = vpack.i.b16 %v706, %v672
        %v724 = vshrl.u32 %v672, 16
        %v725 = vshrl.u32 %v706, 16
        %v726 = vpack.i.b16 %v725, %v724
        %v729 = vpack.i.b16 %v708, %v674
        %v730 = vshrl.u32 %v674, 16
        %v731 = vshrl.u32 %v708, 16
        %v732 = vpack.i.b16 %v731, %v730
        %733 = vrot.lane.b32.xlu0 %v714, 16
        %v734 = vpop.permute.xlu0 %733
        %735 = vrot.lane.b32.xlu0 %v717, 32
        %v736 = vpop.permute.xlu0 %735
        %737 = vrot.lane.b32.xlu0 %v720, 48
        %v738 = vpop.permute.xlu0 %737
        %739 = vrot.lane.b32.xlu0 %v723, 64
        %v740 = vpop.permute.xlu0 %739
        %741 = vrot.lane.b32.xlu0 %v726, 80
        %v742 = vpop.permute.xlu0 %741
        %743 = vrot.lane.b32.xlu0 %v729, 96
        %v744 = vpop.permute.xlu0 %743
        %745 = vrot.lane.b32.xlu0 %v732, 112
        %v746 = vpop.permute.xlu0 %745
        %v749 = vsel %vm607, %v711, %v734
        %v751 = vsel %vm611, %v749, %v736
        %v753 = vsel %vm614, %v751, %v738
        %v755 = vsel %vm617, %v753, %v740
        %v757 = vsel %vm620, %v755, %v742
        %v759 = vsel %vm623, %v757, %v744
        %v761 = vsel %vm626, %v759, %v746
        %762 = vrot.lane.b32.xlu0 %v410, 126
        %v763 = vpop.permute.xlu0 %762
        %764 = vrot.lane.b32.xlu0 %v411, 126
        %v765 = vpop.permute.xlu0 %764
        %766 = vrot.lane.b32.xlu0 %v412, 126
        %v767 = vpop.permute.xlu0 %766
        %768 = vrot.lane.b32.xlu0 %v413, 126
        %v769 = vpop.permute.xlu0 %768
        %v772 = vunpack.c.l.s4 1983009808
        %v773 = vunpack.c.0.s8 %v772
        %v774 = vlaneseq
        %v775 = vshrl.u32 %v774, 7
        %v776 = vsub.s32 %v773, %v775
        %v777 = vrot.slane %v763, %v776
        %v780 = vunpack.c.l.s4 1983009808
        %v781 = vunpack.c.0.s8 %v780
        %v782 = vlaneseq
        %v783 = vshrl.u32 %v782, 7
        %v784 = vsub.s32 %v781, %v783
        %v785 = vrot.slane %v767, %v784
        %v786 = vcombine.low %v777, %v785
        %v787 = vcombine.high %v777, %v785
        %v789 = vunpack.c.l.s4 1934713408
        %v790 = vunpack.c.0.s8 %v789
        %v791 = vlaneseq
        %v792 = vshrl.u32 %v791, 7
        %v793 = vsub.s32 %v790, %v792
        %v794 = vrot.slane %v786, %v793
        %v796 = vunpack.c.l.s4 1934713408
        %v797 = vunpack.c.0.s8 %v796
        %v798 = vlaneseq
        %v799 = vshrl.u32 %v798, 7
        %v800 = vsub.s32 %v797, %v799
        %v801 = vrot.slane %v787, %v800
        %v802 = vcombine.high %v794, 0
        %v803 = vcombine.high %v801, 0
        %v806 = vunpack.c.l.s4 1983009808
        %v807 = vunpack.c.0.s8 %v806
        %v808 = vlaneseq
        %v809 = vshrl.u32 %v808, 7
        %v810 = vsub.s32 %v807, %v809
        %v811 = vrot.slane %v765, %v810
        %v814 = vunpack.c.l.s4 1983009808
        %v815 = vunpack.c.0.s8 %v814
        %v816 = vlaneseq
        %v817 = vshrl.u32 %v816, 7
        %v818 = vsub.s32 %v815, %v817
        %v819 = vrot.slane %v769, %v818
        %v820 = vcombine.low %v811, %v819
        %v821 = vcombine.high %v811, %v819
        %v823 = vunpack.c.l.s4 1934713408
        %v824 = vunpack.c.0.s8 %v823
        %v825 = vlaneseq
        %v826 = vshrl.u32 %v825, 7
        %v827 = vsub.s32 %v824, %v826
        %v828 = vrot.slane %v820, %v827
        %v830 = vunpack.c.l.s4 1934713408
        %v831 = vunpack.c.0.s8 %v830
        %v832 = vlaneseq
        %v833 = vshrl.u32 %v832, 7
        %v834 = vsub.s32 %v831, %v833
        %v835 = vrot.slane %v821, %v834
        %v836 = vcombine.high %v828, 0
        %v837 = vcombine.high %v835, 0
        %v840 = vpack.i.b16 %v828, %v794
        %v841 = vshrl.u32 %v794, 16
        %v842 = vshrl.u32 %v828, 16
        %v843 = vpack.i.b16 %v842, %v841
        %v846 = vpack.i.b16 %v836, %v802
        %v847 = vshrl.u32 %v802, 16
        %v848 = vshrl.u32 %v836, 16
        %v849 = vpack.i.b16 %v848, %v847
        %v852 = vpack.i.b16 %v835, %v801
        %v853 = vshrl.u32 %v801, 16
        %v854 = vshrl.u32 %v835, 16
        %v855 = vpack.i.b16 %v854, %v853
        %v858 = vpack.i.b16 %v837, %v803
        %v859 = vshrl.u32 %v803, 16
        %v860 = vshrl.u32 %v837, 16
        %v861 = vpack.i.b16 %v860, %v859
        %862 = vrot.lane.b32.xlu0 %v843, 16
        %v863 = vpop.permute.xlu0 %862
        %864 = vrot.lane.b32.xlu0 %v846, 32
        %v865 = vpop.permute.xlu0 %864
        %866 = vrot.lane.b32.xlu0 %v849, 48
        %v867 = vpop.permute.xlu0 %866
        %868 = vrot.lane.b32.xlu0 %v852, 64
        %v869 = vpop.permute.xlu0 %868
        %870 = vrot.lane.b32.xlu0 %v855, 80
        %v871 = vpop.permute.xlu0 %870
        %872 = vrot.lane.b32.xlu0 %v858, 96
        %v873 = vpop.permute.xlu0 %872
        %874 = vrot.lane.b32.xlu0 %v861, 112
        %v875 = vpop.permute.xlu0 %874
        %v878 = vsel %vm607, %v840, %v863
        %v880 = vsel %vm611, %v878, %v865
        %v882 = vsel %vm614, %v880, %v867
        %v884 = vsel %vm617, %v882, %v869
        %v886 = vsel %vm620, %v884, %v871
        %v888 = vsel %vm623, %v886, %v873
        %v890 = vsel %vm626, %v888, %v875
        %v893 = vpack.i.b16 %v356, %v355
        %v894 = vshrl.u32 %v355, 16
        %v895 = vshrl.u32 %v356, 16
        %v896 = vpack.i.b16 %v895, %v894
        %v899 = vpack.i.b16 %v358, %v357
        %v900 = vshrl.u32 %v357, 16
        %v901 = vshrl.u32 %v358, 16
        %v902 = vpack.i.b16 %v901, %v900
        %v905 = vunpack.c.l.s4 1983009808
        %v906 = vunpack.c.0.s8 %v905
        %v907 = vlaneseq
        %v908 = vshrl.u32 %v907, 7
        %v909 = vsub.s32 %v906, %v908
        %v910 = vrot.slane %v893, %v909
        %v913 = vunpack.c.l.s4 1983009808
        %v914 = vunpack.c.0.s8 %v913
        %v915 = vlaneseq
        %v916 = vshrl.u32 %v915, 7
        %v917 = vsub.s32 %v914, %v916
        %v918 = vrot.slane %v899, %v917
        %v919 = vcombine.low %v910, %v918
        %v920 = vcombine.high %v910, %v918
        %v922 = vunpack.c.l.s4 1934713408
        %v923 = vunpack.c.0.s8 %v922
        %v924 = vlaneseq
        %v925 = vshrl.u32 %v924, 7
        %v926 = vsub.s32 %v923, %v925
        %v927 = vrot.slane %v919, %v926
        %v929 = vunpack.c.l.s4 1934713408
        %v930 = vunpack.c.0.s8 %v929
        %v931 = vlaneseq
        %v932 = vshrl.u32 %v931, 7
        %v933 = vsub.s32 %v930, %v932
        %v934 = vrot.slane %v920, %v933
        %v935 = vcombine.high %v927, 0
        %v936 = vcombine.high %v934, 0
        %v939 = vunpack.c.l.s4 1983009808
        %v940 = vunpack.c.0.s8 %v939
        %v941 = vlaneseq
        %v942 = vshrl.u32 %v941, 7
        %v943 = vsub.s32 %v940, %v942
        %v944 = vrot.slane %v896, %v943
        %v947 = vunpack.c.l.s4 1983009808
        %v948 = vunpack.c.0.s8 %v947
        %v949 = vlaneseq
        %v950 = vshrl.u32 %v949, 7
        %v951 = vsub.s32 %v948, %v950
        %v952 = vrot.slane %v902, %v951
        %v953 = vcombine.low %v944, %v952
        %v954 = vcombine.high %v944, %v952
        %v956 = vunpack.c.l.s4 1934713408
        %v957 = vunpack.c.0.s8 %v956
        %v958 = vlaneseq
        %v959 = vshrl.u32 %v958, 7
        %v960 = vsub.s32 %v957, %v959
        %v961 = vrot.slane %v953, %v960
        %v963 = vunpack.c.l.s4 1934713408
        %v964 = vunpack.c.0.s8 %v963
        %v965 = vlaneseq
        %v966 = vshrl.u32 %v965, 7
        %v967 = vsub.s32 %v964, %v966
        %v968 = vrot.slane %v954, %v967
        %v969 = vcombine.high %v961, 0
        %v970 = vcombine.high %v968, 0
        %v972 = vunpack.c.l.b16 %v961
        %v973 = vpack.c.b16 %v972, %v972
        %974 = vrot.lane.b32.xlu0 %v973, 16
        %v975 = vpop.permute.xlu0 %974
        %v977 = vunpack.c.l.b16 %v935
        %v978 = vpack.c.b16 %v977, %v977
        %979 = vrot.lane.b32.xlu0 %v978, 32
        %v980 = vpop.permute.xlu0 %979
        %v982 = vunpack.c.l.b16 %v969
        %v983 = vpack.c.b16 %v982, %v982
        %984 = vrot.lane.b32.xlu0 %v983, 48
        %v985 = vpop.permute.xlu0 %984
        %v987 = vunpack.c.l.b16 %v934
        %v988 = vpack.c.b16 %v987, %v987
        %989 = vrot.lane.b32.xlu0 %v988, 64
        %v990 = vpop.permute.xlu0 %989
        %v992 = vunpack.c.l.b16 %v968
        %v993 = vpack.c.b16 %v992, %v992
        %994 = vrot.lane.b32.xlu0 %v993, 80
        %v995 = vpop.permute.xlu0 %994
        %v997 = vunpack.c.l.b16 %v936
        %v998 = vpack.c.b16 %v997, %v997
        %999 = vrot.lane.b32.xlu0 %v998, 96
        %v1000 = vpop.permute.xlu0 %999
        %v1002 = vunpack.c.l.b16 %v970
        %v1003 = vpack.c.b16 %v1002, %v1002
        %1004 = vrot.lane.b32.xlu0 %v1003, 112
        %v1005 = vpop.permute.xlu0 %1004
        %v1008 = vsel %vm607, %v927, %v975
        %v1010 = vsel %vm611, %v1008, %v980
        %v1012 = vsel %vm614, %v1010, %v985
        %v1014 = vsel %vm617, %v1012, %v990
        %v1016 = vsel %vm620, %v1014, %v995
        %v1018 = vsel %vm623, %v1016, %v1000
        %v1020 = vsel %vm626, %v1018, %v1005
        %1021 = vrot.lane.b32.xlu0 %v355, 127
        %v1022 = vpop.permute.xlu0 %1021
        %1023 = vrot.lane.b32.xlu0 %v356, 127
        %v1024 = vpop.permute.xlu0 %1023
        %1025 = vrot.lane.b32.xlu0 %v357, 127
        %v1026 = vpop.permute.xlu0 %1025
        %1027 = vrot.lane.b32.xlu0 %v358, 127
        %v1028 = vpop.permute.xlu0 %1027
        %v1031 = vpack.i.b16 %v1024, %v1022
        %v1032 = vshrl.u32 %v1022, 16
        %v1033 = vshrl.u32 %v1024, 16
        %v1034 = vpack.i.b16 %v1033, %v1032
        %v1037 = vpack.i.b16 %v1028, %v1026
        %v1038 = vshrl.u32 %v1026, 16
        %v1039 = vshrl.u32 %v1028, 16
        %v1040 = vpack.i.b16 %v1039, %v1038
        %v1043 = vunpack.c.l.s4 1983009808
        %v1044 = vunpack.c.0.s8 %v1043
        %v1045 = vlaneseq
        %v1046 = vshrl.u32 %v1045, 7
        %v1047 = vsub.s32 %v1044, %v1046
        %v1048 = vrot.slane %v1031, %v1047
        %v1051 = vunpack.c.l.s4 1983009808
        %v1052 = vunpack.c.0.s8 %v1051
        %v1053 = vlaneseq
        %v1054 = vshrl.u32 %v1053, 7
        %v1055 = vsub.s32 %v1052, %v1054
        %v1056 = vrot.slane %v1037, %v1055
        %v1057 = vcombine.low %v1048, %v1056
        %v1058 = vcombine.high %v1048, %v1056
        %v1060 = vunpack.c.l.s4 1934713408
        %v1061 = vunpack.c.0.s8 %v1060
        %v1062 = vlaneseq
        %v1063 = vshrl.u32 %v1062, 7
        %v1064 = vsub.s32 %v1061, %v1063
        %v1065 = vrot.slane %v1057, %v1064
        %v1067 = vunpack.c.l.s4 1934713408
        %v1068 = vunpack.c.0.s8 %v1067
        %v1069 = vlaneseq
        %v1070 = vshrl.u32 %v1069, 7
        %v1071 = vsub.s32 %v1068, %v1070
        %v1072 = vrot.slane %v1058, %v1071
        %v1073 = vcombine.high %v1065, 0
        %v1074 = vcombine.high %v1072, 0
        %v1077 = vunpack.c.l.s4 1983009808
        %v1078 = vunpack.c.0.s8 %v1077
        %v1079 = vlaneseq
        %v1080 = vshrl.u32 %v1079, 7
        %v1081 = vsub.s32 %v1078, %v1080
        %v1082 = vrot.slane %v1034, %v1081
        %v1085 = vunpack.c.l.s4 1983009808
        %v1086 = vunpack.c.0.s8 %v1085
        %v1087 = vlaneseq
        %v1088 = vshrl.u32 %v1087, 7
        %v1089 = vsub.s32 %v1086, %v1088
        %v1090 = vrot.slane %v1040, %v1089
        %v1091 = vcombine.low %v1082, %v1090
        %v1092 = vcombine.high %v1082, %v1090
        %v1094 = vunpack.c.l.s4 1934713408
        %v1095 = vunpack.c.0.s8 %v1094
        %v1096 = vlaneseq
        %v1097 = vshrl.u32 %v1096, 7
        %v1098 = vsub.s32 %v1095, %v1097
        %v1099 = vrot.slane %v1091, %v1098
        %v1101 = vunpack.c.l.s4 1934713408
        %v1102 = vunpack.c.0.s8 %v1101
        %v1103 = vlaneseq
        %v1104 = vshrl.u32 %v1103, 7
        %v1105 = vsub.s32 %v1102, %v1104
        %v1106 = vrot.slane %v1092, %v1105
        %v1107 = vcombine.high %v1099, 0
        %v1108 = vcombine.high %v1106, 0
        %v1110 = vunpack.c.l.b16 %v1099
        %v1111 = vpack.c.b16 %v1110, %v1110
        %1112 = vrot.lane.b32.xlu0 %v1111, 16
        %v1113 = vpop.permute.xlu0 %1112
        %v1115 = vunpack.c.l.b16 %v1073
        %v1116 = vpack.c.b16 %v1115, %v1115
        %1117 = vrot.lane.b32.xlu0 %v1116, 32
        %v1118 = vpop.permute.xlu0 %1117
        %v1120 = vunpack.c.l.b16 %v1107
        %v1121 = vpack.c.b16 %v1120, %v1120
        %1122 = vrot.lane.b32.xlu0 %v1121, 48
        %v1123 = vpop.permute.xlu0 %1122
        %v1125 = vunpack.c.l.b16 %v1072
        %v1126 = vpack.c.b16 %v1125, %v1125
        %1127 = vrot.lane.b32.xlu0 %v1126, 64
        %v1128 = vpop.permute.xlu0 %1127
        %v1130 = vunpack.c.l.b16 %v1106
        %v1131 = vpack.c.b16 %v1130, %v1130
        %1132 = vrot.lane.b32.xlu0 %v1131, 80
        %v1133 = vpop.permute.xlu0 %1132
        %v1135 = vunpack.c.l.b16 %v1074
        %v1136 = vpack.c.b16 %v1135, %v1135
        %1137 = vrot.lane.b32.xlu0 %v1136, 96
        %v1138 = vpop.permute.xlu0 %1137
        %v1140 = vunpack.c.l.b16 %v1108
        %v1141 = vpack.c.b16 %v1140, %v1140
        %1142 = vrot.lane.b32.xlu0 %v1141, 112
        %v1143 = vpop.permute.xlu0 %1142
        %v1146 = vsel %vm607, %v1065, %v1113
        %v1148 = vsel %vm611, %v1146, %v1118
        %v1150 = vsel %vm614, %v1148, %v1123
        %v1152 = vsel %vm617, %v1150, %v1128
        %v1154 = vsel %vm620, %v1152, %v1133
        %v1156 = vsel %vm623, %v1154, %v1138
        %v1158 = vsel %vm626, %v1156, %v1143
        %1159 = vrot.lane.b32.xlu0 %v355, 126
        %v1160 = vpop.permute.xlu0 %1159
        %1161 = vrot.lane.b32.xlu0 %v356, 126
        %v1162 = vpop.permute.xlu0 %1161
        %1163 = vrot.lane.b32.xlu0 %v357, 126
        %v1164 = vpop.permute.xlu0 %1163
        %1165 = vrot.lane.b32.xlu0 %v358, 126
        %v1166 = vpop.permute.xlu0 %1165
        %v1169 = vpack.i.b16 %v1162, %v1160
        %v1170 = vshrl.u32 %v1160, 16
        %v1171 = vshrl.u32 %v1162, 16
        %v1172 = vpack.i.b16 %v1171, %v1170
        %v1175 = vpack.i.b16 %v1166, %v1164
        %v1176 = vshrl.u32 %v1164, 16
        %v1177 = vshrl.u32 %v1166, 16
        %v1178 = vpack.i.b16 %v1177, %v1176
        %v1181 = vunpack.c.l.s4 1983009808
        %v1182 = vunpack.c.0.s8 %v1181
        %v1183 = vlaneseq
        %v1184 = vshrl.u32 %v1183, 7
        %v1185 = vsub.s32 %v1182, %v1184
        %v1186 = vrot.slane %v1169, %v1185
        %v1189 = vunpack.c.l.s4 1983009808
        %v1190 = vunpack.c.0.s8 %v1189
        %v1191 = vlaneseq
        %v1192 = vshrl.u32 %v1191, 7
        %v1193 = vsub.s32 %v1190, %v1192
        %v1194 = vrot.slane %v1175, %v1193
        %v1195 = vcombine.low %v1186, %v1194
        %v1196 = vcombine.high %v1186, %v1194
        %v1198 = vunpack.c.l.s4 1934713408
        %v1199 = vunpack.c.0.s8 %v1198
        %v1200 = vlaneseq
        %v1201 = vshrl.u32 %v1200, 7
        %v1202 = vsub.s32 %v1199, %v1201
        %v1203 = vrot.slane %v1195, %v1202
        %v1205 = vunpack.c.l.s4 1934713408
        %v1206 = vunpack.c.0.s8 %v1205
        %v1207 = vlaneseq
        %v1208 = vshrl.u32 %v1207, 7
        %v1209 = vsub.s32 %v1206, %v1208
        %v1210 = vrot.slane %v1196, %v1209
        %v1211 = vcombine.high %v1203, 0
        %v1212 = vcombine.high %v1210, 0
        %v1215 = vunpack.c.l.s4 1983009808
        %v1216 = vunpack.c.0.s8 %v1215
        %v1217 = vlaneseq
        %v1218 = vshrl.u32 %v1217, 7
        %v1219 = vsub.s32 %v1216, %v1218
        %v1220 = vrot.slane %v1172, %v1219
        %v1223 = vunpack.c.l.s4 1983009808
        %v1224 = vunpack.c.0.s8 %v1223
        %v1225 = vlaneseq
        %v1226 = vshrl.u32 %v1225, 7
        %v1227 = vsub.s32 %v1224, %v1226
        %v1228 = vrot.slane %v1178, %v1227
        %v1229 = vcombine.low %v1220, %v1228
        %v1230 = vcombine.high %v1220, %v1228
        %v1232 = vunpack.c.l.s4 1934713408
        %v1233 = vunpack.c.0.s8 %v1232
        %v1234 = vlaneseq
        %v1235 = vshrl.u32 %v1234, 7
        %v1236 = vsub.s32 %v1233, %v1235
        %v1237 = vrot.slane %v1229, %v1236
        %v1239 = vunpack.c.l.s4 1934713408
        %v1240 = vunpack.c.0.s8 %v1239
        %v1241 = vlaneseq
        %v1242 = vshrl.u32 %v1241, 7
        %v1243 = vsub.s32 %v1240, %v1242
        %v1244 = vrot.slane %v1230, %v1243
        %v1245 = vcombine.high %v1237, 0
        %v1246 = vcombine.high %v1244, 0
        %v1248 = vunpack.c.l.b16 %v1237
        %v1249 = vpack.c.b16 %v1248, %v1248
        %1250 = vrot.lane.b32.xlu0 %v1249, 16
        %v1251 = vpop.permute.xlu0 %1250
        %v1253 = vunpack.c.l.b16 %v1211
        %v1254 = vpack.c.b16 %v1253, %v1253
        %1255 = vrot.lane.b32.xlu0 %v1254, 32
        %v1256 = vpop.permute.xlu0 %1255
        %v1258 = vunpack.c.l.b16 %v1245
        %v1259 = vpack.c.b16 %v1258, %v1258
        %1260 = vrot.lane.b32.xlu0 %v1259, 48
        %v1261 = vpop.permute.xlu0 %1260
        %v1263 = vunpack.c.l.b16 %v1210
        %v1264 = vpack.c.b16 %v1263, %v1263
        %1265 = vrot.lane.b32.xlu0 %v1264, 64
        %v1266 = vpop.permute.xlu0 %1265
        %v1268 = vunpack.c.l.b16 %v1244
        %v1269 = vpack.c.b16 %v1268, %v1268
        %1270 = vrot.lane.b32.xlu0 %v1269, 80
        %v1271 = vpop.permute.xlu0 %1270
        %v1273 = vunpack.c.l.b16 %v1212
        %v1274 = vpack.c.b16 %v1273, %v1273
        %1275 = vrot.lane.b32.xlu0 %v1274, 96
        %v1276 = vpop.permute.xlu0 %1275
        %v1278 = vunpack.c.l.b16 %v1246
        %v1279 = vpack.c.b16 %v1278, %v1278
        %1280 = vrot.lane.b32.xlu0 %v1279, 112
        %v1281 = vpop.permute.xlu0 %1280
        %v1284 = vsel %vm607, %v1203, %v1251
        %v1286 = vsel %vm611, %v1284, %v1256
        %v1288 = vsel %vm614, %v1286, %v1261
        %v1290 = vsel %vm617, %v1288, %v1266
        %v1292 = vsel %vm620, %v1290, %v1271
        %v1294 = vsel %vm623, %v1292, %v1276
        %v1296 = vsel %vm626, %v1294, %v1281
        %v1298 = vunpack.c.l.s4 1983009808
        %v1299 = vunpack.c.0.s8 %v1298
        %v1300 = vlaneseq
        %v1301 = vshrl.u32 %v1300, 7
        %v1302 = vsub.s32 %v1299, %v1301
        %v1303 = vrot.slane %v501, %v1302
        %v1305 = vunpack.c.l.s4 1983009808
        %v1306 = vunpack.c.0.s8 %v1305
        %v1307 = vlaneseq
        %v1308 = vshrl.u32 %v1307, 7
        %v1309 = vsub.s32 %v1306, %v1308
        %v1310 = vrot.slane %v503, %v1309
        %v1311 = vcombine.low %v1303, %v1310
        %v1312 = vcombine.high %v1303, %v1310
        %v1314 = vunpack.c.l.s4 1934713408
        %v1315 = vunpack.c.0.s8 %v1314
        %v1316 = vlaneseq
        %v1317 = vshrl.u32 %v1316, 7
        %v1318 = vsub.s32 %v1315, %v1317
        %v1319 = vrot.slane %v1311, %v1318
        %v1321 = vunpack.c.l.s4 1934713408
        %v1322 = vunpack.c.0.s8 %v1321
        %v1323 = vlaneseq
        %v1324 = vshrl.u32 %v1323, 7
        %v1325 = vsub.s32 %v1322, %v1324
        %v1326 = vrot.slane %v1312, %v1325
        %v1327 = vcombine.high %v1319, 0
        %v1328 = vcombine.high %v1326, 0
        %v1330 = vunpack.c.l.s4 1983009808
        %v1331 = vunpack.c.0.s8 %v1330
        %v1332 = vlaneseq
        %v1333 = vshrl.u32 %v1332, 7
        %v1334 = vsub.s32 %v1331, %v1333
        %v1335 = vrot.slane %v502, %v1334
        %v1337 = vunpack.c.l.s4 1983009808
        %v1338 = vunpack.c.0.s8 %v1337
        %v1339 = vlaneseq
        %v1340 = vshrl.u32 %v1339, 7
        %v1341 = vsub.s32 %v1338, %v1340
        %v1342 = vrot.slane %v504, %v1341
        %v1343 = vcombine.low %v1335, %v1342
        %v1344 = vcombine.high %v1335, %v1342
        %v1346 = vunpack.c.l.s4 1934713408
        %v1347 = vunpack.c.0.s8 %v1346
        %v1348 = vlaneseq
        %v1349 = vshrl.u32 %v1348, 7
        %v1350 = vsub.s32 %v1347, %v1349
        %v1351 = vrot.slane %v1343, %v1350
        %v1353 = vunpack.c.l.s4 1934713408
        %v1354 = vunpack.c.0.s8 %v1353
        %v1355 = vlaneseq
        %v1356 = vshrl.u32 %v1355, 7
        %v1357 = vsub.s32 %v1354, %v1356
        %v1358 = vrot.slane %v1344, %v1357
        %v1359 = vcombine.high %v1351, 0
        %v1360 = vcombine.high %v1358, 0
        %v1363 = vpack.i.b16 %v1351, %v1319
        %v1364 = vshrl.u32 %v1319, 16
        %v1365 = vshrl.u32 %v1351, 16
        %v1366 = vpack.i.b16 %v1365, %v1364
        %v1369 = vpack.i.b16 %v1359, %v1327
        %v1370 = vshrl.u32 %v1327, 16
        %v1371 = vshrl.u32 %v1359, 16
        %v1372 = vpack.i.b16 %v1371, %v1370
        %v1375 = vpack.i.b16 %v1358, %v1326
        %v1376 = vshrl.u32 %v1326, 16
        %v1377 = vshrl.u32 %v1358, 16
        %v1378 = vpack.i.b16 %v1377, %v1376
        %v1381 = vpack.i.b16 %v1360, %v1328
        %v1382 = vshrl.u32 %v1328, 16
        %v1383 = vshrl.u32 %v1360, 16
        %v1384 = vpack.i.b16 %v1383, %v1382
        %1385 = vrot.lane.b32.xlu0 %v1366, 16
        %v1386 = vpop.permute.xlu0 %1385
        %1387 = vrot.lane.b32.xlu0 %v1369, 32
        %v1388 = vpop.permute.xlu0 %1387
        %1389 = vrot.lane.b32.xlu0 %v1372, 48
        %v1390 = vpop.permute.xlu0 %1389
        %1391 = vrot.lane.b32.xlu0 %v1375, 64
        %v1392 = vpop.permute.xlu0 %1391
        %1393 = vrot.lane.b32.xlu0 %v1378, 80
        %v1394 = vpop.permute.xlu0 %1393
        %1395 = vrot.lane.b32.xlu0 %v1381, 96
        %v1396 = vpop.permute.xlu0 %1395
        %1397 = vrot.lane.b32.xlu0 %v1384, 112
        %v1398 = vpop.permute.xlu0 %1397
        %v1401 = vsel %vm607, %v1363, %v1386
        %v1403 = vsel %vm611, %v1401, %v1388
        %v1405 = vsel %vm614, %v1403, %v1390
        %v1407 = vsel %vm617, %v1405, %v1392
        %v1409 = vsel %vm620, %v1407, %v1394
        %v1411 = vsel %vm623, %v1409, %v1396
        %v1413 = vsel %vm626, %v1411, %v1398
        %1418 = vrot.lane.b32.xlu0 %v501, 127
        %v1419 = vpop.permute.xlu0 %1418
        %1420 = vrot.lane.b32.xlu0 %v502, 127
        %v1421 = vpop.permute.xlu0 %1420
        %1422 = vrot.lane.b32.xlu0 %v503, 127
        %v1423 = vpop.permute.xlu0 %1422
        %1424 = vrot.lane.b32.xlu0 %v504, 127
        %v1425 = vpop.permute.xlu0 %1424
        %v1428 = vunpack.c.l.s4 1983009808
        %v1429 = vunpack.c.0.s8 %v1428
        %v1430 = vlaneseq
        %v1431 = vshrl.u32 %v1430, 7
        %v1432 = vsub.s32 %v1429, %v1431
        %v1433 = vrot.slane %v1419, %v1432
        %v1436 = vunpack.c.l.s4 1983009808
        %v1437 = vunpack.c.0.s8 %v1436
        %v1438 = vlaneseq
        %v1439 = vshrl.u32 %v1438, 7
        %v1440 = vsub.s32 %v1437, %v1439
        %v1441 = vrot.slane %v1423, %v1440
        %v1442 = vcombine.low %v1433, %v1441
        %v1443 = vcombine.high %v1433, %v1441
        %v1445 = vunpack.c.l.s4 1934713408
        %v1446 = vunpack.c.0.s8 %v1445
        %v1447 = vlaneseq
        %v1448 = vshrl.u32 %v1447, 7
        %v1449 = vsub.s32 %v1446, %v1448
        %v1450 = vrot.slane %v1442, %v1449
        %v1452 = vunpack.c.l.s4 1934713408
        %v1453 = vunpack.c.0.s8 %v1452
        %v1454 = vlaneseq
        %v1455 = vshrl.u32 %v1454, 7
        %v1456 = vsub.s32 %v1453, %v1455
        %v1457 = vrot.slane %v1443, %v1456
        %v1458 = vcombine.high %v1450, 0
        %v1459 = vcombine.high %v1457, 0
        %v1462 = vunpack.c.l.s4 1983009808
        %v1463 = vunpack.c.0.s8 %v1462
        %v1464 = vlaneseq
        %v1465 = vshrl.u32 %v1464, 7
        %v1466 = vsub.s32 %v1463, %v1465
        %v1467 = vrot.slane %v1421, %v1466
        %v1470 = vunpack.c.l.s4 1983009808
        %v1471 = vunpack.c.0.s8 %v1470
        %v1472 = vlaneseq
        %v1473 = vshrl.u32 %v1472, 7
        %v1474 = vsub.s32 %v1471, %v1473
        %v1475 = vrot.slane %v1425, %v1474
        %v1476 = vcombine.low %v1467, %v1475
        %v1477 = vcombine.high %v1467, %v1475
        %v1479 = vunpack.c.l.s4 1934713408
        %v1480 = vunpack.c.0.s8 %v1479
        %v1481 = vlaneseq
        %v1482 = vshrl.u32 %v1481, 7
        %v1483 = vsub.s32 %v1480, %v1482
        %v1484 = vrot.slane %v1476, %v1483
        %v1486 = vunpack.c.l.s4 1934713408
        %v1487 = vunpack.c.0.s8 %v1486
        %v1488 = vlaneseq
        %v1489 = vshrl.u32 %v1488, 7
        %v1490 = vsub.s32 %v1487, %v1489
        %v1491 = vrot.slane %v1477, %v1490
        %v1492 = vcombine.high %v1484, 0
        %v1493 = vcombine.high %v1491, 0
        %v1496 = vpack.i.b16 %v1484, %v1450
        %v1497 = vshrl.u32 %v1450, 16
        %v1498 = vshrl.u32 %v1484, 16
        %v1499 = vpack.i.b16 %v1498, %v1497
        %v1502 = vpack.i.b16 %v1492, %v1458
        %v1503 = vshrl.u32 %v1458, 16
        %v1504 = vshrl.u32 %v1492, 16
        %v1505 = vpack.i.b16 %v1504, %v1503
        %v1508 = vpack.i.b16 %v1491, %v1457
        %v1509 = vshrl.u32 %v1457, 16
        %v1510 = vshrl.u32 %v1491, 16
        %v1511 = vpack.i.b16 %v1510, %v1509
        %v1514 = vpack.i.b16 %v1493, %v1459
        %v1515 = vshrl.u32 %v1459, 16
        %v1516 = vshrl.u32 %v1493, 16
        %v1517 = vpack.i.b16 %v1516, %v1515
        %1518 = vrot.lane.b32.xlu0 %v1499, 16
        %v1519 = vpop.permute.xlu0 %1518
        %1520 = vrot.lane.b32.xlu0 %v1502, 32
        %v1521 = vpop.permute.xlu0 %1520
        %1522 = vrot.lane.b32.xlu0 %v1505, 48
        %v1523 = vpop.permute.xlu0 %1522
        %1524 = vrot.lane.b32.xlu0 %v1508, 64
        %v1525 = vpop.permute.xlu0 %1524
        %1526 = vrot.lane.b32.xlu0 %v1511, 80
        %v1527 = vpop.permute.xlu0 %1526
        %1528 = vrot.lane.b32.xlu0 %v1514, 96
        %v1529 = vpop.permute.xlu0 %1528
        %1530 = vrot.lane.b32.xlu0 %v1517, 112
        %v1531 = vpop.permute.xlu0 %1530
        %v1534 = vsel %vm607, %v1496, %v1519
        %v1536 = vsel %vm611, %v1534, %v1521
        %v1538 = vsel %vm614, %v1536, %v1523
        %v1540 = vsel %vm617, %v1538, %v1525
        %v1542 = vsel %vm620, %v1540, %v1527
        %v1544 = vsel %vm623, %v1542, %v1529
        %v1546 = vsel %vm626, %v1544, %v1531
        %1547 = vrot.lane.b32.xlu0 %v501, 126
        %v1548 = vpop.permute.xlu0 %1547
        %1549 = vrot.lane.b32.xlu0 %v502, 126
        %v1550 = vpop.permute.xlu0 %1549
        %1551 = vrot.lane.b32.xlu0 %v503, 126
        %v1552 = vpop.permute.xlu0 %1551
        %1553 = vrot.lane.b32.xlu0 %v504, 126
        %v1554 = vpop.permute.xlu0 %1553
        %v1557 = vunpack.c.l.s4 1983009808
        %v1558 = vunpack.c.0.s8 %v1557
        %v1559 = vlaneseq
        %v1560 = vshrl.u32 %v1559, 7
        %v1561 = vsub.s32 %v1558, %v1560
        %v1562 = vrot.slane %v1548, %v1561
        %v1565 = vunpack.c.l.s4 1983009808
        %v1566 = vunpack.c.0.s8 %v1565
        %v1567 = vlaneseq
        %v1568 = vshrl.u32 %v1567, 7
        %v1569 = vsub.s32 %v1566, %v1568
        %v1570 = vrot.slane %v1552, %v1569
        %v1571 = vcombine.low %v1562, %v1570
        %v1572 = vcombine.high %v1562, %v1570
        %v1574 = vunpack.c.l.s4 1934713408
        %v1575 = vunpack.c.0.s8 %v1574
        %v1576 = vlaneseq
        %v1577 = vshrl.u32 %v1576, 7
        %v1578 = vsub.s32 %v1575, %v1577
        %v1579 = vrot.slane %v1571, %v1578
        %v1581 = vunpack.c.l.s4 1934713408
        %v1582 = vunpack.c.0.s8 %v1581
        %v1583 = vlaneseq
        %v1584 = vshrl.u32 %v1583, 7
        %v1585 = vsub.s32 %v1582, %v1584
        %v1586 = vrot.slane %v1572, %v1585
        %v1587 = vcombine.high %v1579, 0
        %v1588 = vcombine.high %v1586, 0
        %v1591 = vunpack.c.l.s4 1983009808
        %v1592 = vunpack.c.0.s8 %v1591
        %v1593 = vlaneseq
        %v1594 = vshrl.u32 %v1593, 7
        %v1595 = vsub.s32 %v1592, %v1594
        %v1596 = vrot.slane %v1550, %v1595
        %v1599 = vunpack.c.l.s4 1983009808
        %v1600 = vunpack.c.0.s8 %v1599
        %v1601 = vlaneseq
        %v1602 = vshrl.u32 %v1601, 7
        %v1603 = vsub.s32 %v1600, %v1602
        %v1604 = vrot.slane %v1554, %v1603
        %v1605 = vcombine.low %v1596, %v1604
        %v1606 = vcombine.high %v1596, %v1604
        %v1608 = vunpack.c.l.s4 1934713408
        %v1609 = vunpack.c.0.s8 %v1608
        %v1610 = vlaneseq
        %v1611 = vshrl.u32 %v1610, 7
        %v1612 = vsub.s32 %v1609, %v1611
        %v1613 = vrot.slane %v1605, %v1612
        %v1615 = vunpack.c.l.s4 1934713408
        %v1616 = vunpack.c.0.s8 %v1615
        %v1617 = vlaneseq
        %v1618 = vshrl.u32 %v1617, 7
        %v1619 = vsub.s32 %v1616, %v1618
        %v1620 = vrot.slane %v1606, %v1619
        %v1621 = vcombine.high %v1613, 0
        %v1622 = vcombine.high %v1620, 0
        %v1625 = vpack.i.b16 %v1613, %v1579
        %v1626 = vshrl.u32 %v1579, 16
        %v1627 = vshrl.u32 %v1613, 16
        %v1628 = vpack.i.b16 %v1627, %v1626
        %v1631 = vpack.i.b16 %v1621, %v1587
        %v1632 = vshrl.u32 %v1587, 16
        %v1633 = vshrl.u32 %v1621, 16
        %v1634 = vpack.i.b16 %v1633, %v1632
        %v1637 = vpack.i.b16 %v1620, %v1586
        %v1638 = vshrl.u32 %v1586, 16
        %v1639 = vshrl.u32 %v1620, 16
        %v1640 = vpack.i.b16 %v1639, %v1638
        %v1643 = vpack.i.b16 %v1622, %v1588
        %v1644 = vshrl.u32 %v1588, 16
        %v1645 = vshrl.u32 %v1622, 16
        %v1646 = vpack.i.b16 %v1645, %v1644
        %1647 = vrot.lane.b32.xlu0 %v1628, 16
        %v1648 = vpop.permute.xlu0 %1647
        %1649 = vrot.lane.b32.xlu0 %v1631, 32
        %v1650 = vpop.permute.xlu0 %1649
        %1651 = vrot.lane.b32.xlu0 %v1634, 48
        %v1652 = vpop.permute.xlu0 %1651
        %1653 = vrot.lane.b32.xlu0 %v1637, 64
        %v1654 = vpop.permute.xlu0 %1653
        %1655 = vrot.lane.b32.xlu0 %v1640, 80
        %v1656 = vpop.permute.xlu0 %1655
        %1657 = vrot.lane.b32.xlu0 %v1643, 96
        %v1658 = vpop.permute.xlu0 %1657
        %1659 = vrot.lane.b32.xlu0 %v1646, 112
        %v1660 = vpop.permute.xlu0 %1659
        %v1663 = vsel %vm607, %v1625, %v1648
        %v1665 = vsel %vm611, %v1663, %v1650
        %v1667 = vsel %vm614, %v1665, %v1652
        %v1669 = vsel %vm617, %v1667, %v1654
        %v1671 = vsel %vm620, %v1669, %v1656
        %v1673 = vsel %vm623, %v1671, %v1658
        %v1675 = vsel %vm626, %v1673, %v1660
        %v1677 = vrot.slane %v761, 6
        %v1679 = vrot.slane %v890, 4
        %v1681 = vrot.slane %v1020, 2
        %v1683 = vrot.slane %v1296, 6
        %v1685 = vrot.slane %v1413, 4
        %v1687 = vrot.slane %v1546, 2
        %vm1688 = vcmask 1041408
        %v1690 = vsel %vm1688, %v628, %v1677
        %vm1691 = vcmask 1043456
        %v1693 = vsel %vm1691, %v1690, %v1679
        %vm1694 = vcmask 1045504
        %v1696 = vsel %vm1694, %v1693, %v1681
        %v1699 = vsel %vm1688, %v1158, %v1683
        %v1701 = vsel %vm1691, %v1699, %v1685
        %v1703 = vsel %vm1694, %v1701, %v1687
        %v1705 = vld [vmem:[%s2] sm:$0xf]
        %v1706 = vld [vmem:[%s3] sm:$0xff]
        %1708 = vset.pattern.permute.xlu0 0
        %1709 = vperm.xlu0 %1708, %v1706
        %v1710 = vpop.permute.xlu0 %1709
        %vm1712 = vcmask 293888
        %v1714 = vsel %vm1712, %v1705, 0
        %v1716 = vsel %vm1688, %v1675, 0
        %1718 = vmatprep.subr.bf16.mxu0 0
        %1719 = vmatpush1.bf16.msra.mxu0 %v1696
        %1720 = vmatprep.subr.bf16.mxu0 0
        %1721 = vmatpush1.bf16.msra.mxu0 %v1703
        %1722 = vmatprep.subr.bf16.mxu0 0
        %1723 = vmatpush1.bf16.msra.mxu0 %v1716
        %1724 = vmatprep.subr.bf16.mxu0 0
        %1725 = vmatpush1.bf16.msra.mxu0 0
        %1726 = vmatprep.subr.bf16.mxu0 0
        %1727 = vmatpush1.bf16.msra.mxu0 0
        %1728 = vmatprep.subr.bf16.mxu0 0
        %1729 = vmatpush1.bf16.msra.mxu0 0
        %1730 = vmatprep.subr.bf16.mxu0 0
        %1731 = vmatpush1.bf16.msra.mxu0 0
        %1732 = vmatprep.subr.bf16.mxu0 0
        %1733 = vmatpush1.bf16.msra.mxu0 0
        %1734 = vmatprep.subr.bf16.mxu0 0
        %1735 = vmatpush1.bf16.msra.mxu0 0
        %1736 = vmatprep.subr.bf16.mxu0 0
        %1737 = vmatpush1.bf16.msra.mxu0 0
        %1738 = vmatprep.subr.bf16.mxu0 0
        %1739 = vmatpush1.bf16.msra.mxu0 0
        %1740 = vmatprep.subr.bf16.mxu0 0
        %1741 = vmatpush1.bf16.msra.mxu0 0
        %1742 = vmatprep.subr.bf16.mxu0 0
        %1743 = vmatpush1.bf16.msra.mxu0 0
        %1744 = vmatprep.subr.bf16.mxu0 0
        %1745 = vmatpush1.bf16.msra.mxu0 0
        %1746 = vmatprep.subr.bf16.mxu0 0
        %1747 = vmatpush1.bf16.msra.mxu0 0
        %1748 = vmatprep.subr.bf16.mxu0 0
        %1749 = vmatpush1.bf16.msra.mxu0 0
        %1750 = vmatprep.mubr.bf16.mxu0 0
        %1751 = vmatmul.mubr.bf16.gmra.mrb[0].mxu0 %v1714
        %v1752 = vpop.f32.mrb[0].mxu0
        %v1753 = vadd.f32 %v1710, %v1752
        %v1754 = vpop.f32.mrb[0].mxu0
        %v1755 = vpop.f32.mrb[0].mxu0
        %v1756 = vpop.f32.mrb[0].mxu0
        %1757 = vdwg.mxu0
        %v1758 = vmax.f32 %v1753, 0.0
        %v1759 = vpack.c.bf16 %v1758, %v1758
        %1760 = vst [vmem:[%s345] sm:$0xf] %v1759
        %1761 = vadd.xlane.f32.xlu0 %v1758
        %v1762 = vpop.xlane.xlu0 %1761
        %vm1763 = vcmask 7168
        %1764 = vst.msk [vmem:[%s353] sm:$0xff] %vm1763, %v1762
        %p1765 = scmp.lt.s32.totalorder %s21, 1
        %s1766 = scalar_select %p1765, %s21, 1
        %p1767 = scmp.lt.s32.totalorder %s22, 1
        %s1768 = scalar_select %p1767, %s22, 1
        %s1769 = smul.addr %s1766, 2
        %s1770 = sadd.s32 %s1768, %s1769
        %s1771 = smul.addr %s1770, 4
        %s1772 = scalar_lea.vmem %s4, %s1771
        %p1773 = scmp.lt.s32.totalorder %s21, 1
        %s1774 = scalar_select %p1773, %s21, 1
        %p1775 = scmp.lt.s32.totalorder %s22, 1
        %s1776 = scalar_select %p1775, %s22, 1
        %s1777 = smul.addr %s1774, 2
        %s1778 = sadd.s32 %s1776, %s1777
        %s1779 = smul.addr %s1778, 8
        %s1780 = scalar_lea.vmem %s5, %s1779
        // Predicated region
        $region78: #{attention_block_forward.2} parent=72 // pred_check
          %p1781 = pneg %p147
        $region79: #{attention_block_forward.2} parent=72 // pred_check_branch
          %1783 = sbr.rel (%p1781) target = $region81
        $region80: #{attention_block_forward.2} parent=72 // pred_region
          _
        $region81: #{attention_block_forward.2} parent=72 // pred_fallthru
          _
        // Predicated region
        $region82: #{attention_block_forward.2} parent=72 // pred_check
          %p1784 = pneg %p175
        $region83: #{attention_block_forward.2} parent=72 // pred_check_branch
          %1786 = sbr.rel (%p1784) target = $region85
        $region84: #{attention_block_forward.2} parent=72 // pred_region
          _
        $region85: #{attention_block_forward.2} parent=72 // pred_fallthru
          _
      $region73: #{attention_block_forward.2} parent=5 // pred_fallthru
        _
      %p1787 = scmp.le.s32.totalorder 2, %s12
      // Predicated region
      $region86: #{attention_block_forward.2} parent=5 // pred_check
        %p1788 = pneg %p1787
      $region87: #{attention_block_forward.2} parent=5 // pred_check_branch
        %1790 = sbr.rel (%p1788) target = $region89
      $region88: #{attention_block_forward.2} parent=5 // pred_region
        %s1791 = ssub.s32 %s12, 2
        // Predicated region
        $region90: #{attention_block_forward.2} parent=88 // pred_check
          %p1792 = pneg %p153
        $region91: #{attention_block_forward.2} parent=88 // pred_check_branch
          %1794 = sbr.rel (%p1792) target = $region93
        $region92: #{attention_block_forward.2} parent=88 // pred_region
          %p1795 = scmp.lt.s32.totalorder %s23, 1
          %s1796 = scalar_select %p1795, %s23, 1
          %p1797 = scmp.lt.s32.totalorder %s24, 1
          %s1798 = scalar_select %p1797, %s24, 1
          %s1799 = smul.addr %s1796, 2
          %s1800 = sadd.s32 %s1798, %s1799
          %s1801 = smul.addr %s1800, 4
          %s1802 = scalar_lea.vmem %s4, %s1801
        $region93: #{attention_block_forward.2} parent=88 // pred_fallthru
          _
        // Predicated region
        $region94: #{attention_block_forward.2} parent=88 // pred_check
          %p1803 = pneg %p181
        $region95: #{attention_block_forward.2} parent=88 // pred_check_branch
          %1805 = sbr.rel (%p1803) target = $region97
        $region96: #{attention_block_forward.2} parent=88 // pred_region
          %p1806 = scmp.lt.s32.totalorder %s23, 1
          %s1807 = scalar_select %p1806, %s23, 1
          %p1808 = scmp.lt.s32.totalorder %s24, 1
          %s1809 = scalar_select %p1808, %s24, 1
          %s1810 = smul.addr %s1807, 2
          %s1811 = sadd.s32 %s1809, %s1810
          %s1812 = smul.addr %s1811, 8
          %s1813 = scalar_lea.vmem %s5, %s1812
        $region97: #{attention_block_forward.2} parent=88 // pred_fallthru
          _
      $region89: #{attention_block_forward.2} parent=5 // pred_fallthru
        _
    $region6: #{attention_block_forward.2} parent=1 // loop_footer
      %s16 = sadd.s32 1, %s12
    $region7: #{attention_block_forward.2} parent=1 // loop_footer_branch
      %11 = sbr.rel target = $region3
    $region8: #{attention_block_forward.2} parent=1 // loop_exit
      _

</llo_original>
